<compile_context>
chip_gen: v5e
topology: v5e:2x2
jax: 0.10.0
libtpu: 0.0.40
codegen_flags: <defaults>
</compile_context>

<pallas_src>
import functools

import jax
import jax.numpy as jnp
import numpy as np
from jax import lax
from jax.experimental import pallas as pl
from jax.experimental.pallas import tpu as pltpu


# ---------------------------------------------------------------------------
# Fused forward kernel
# ---------------------------------------------------------------------------
def _fused_forward_kernel(Bp, x_ref,
                          w1_ref, b1_ref, w2_ref, b2_ref, w3_ref, b3_ref,
                          wf1_ref, bf1_ref, wf2_ref, bf2_ref,
                          o_ref,
                          p1_ref, p2_ref, p3_ref):
    # x_ref:   (Lin*Bp, 1)  rows ordered l*Bp + b  (prepared by the wrapper)
    # convN weights: (K*Cin, Cout); biases: (1, Cout)
    # wf1: (Lp3*256, 128) columns pre-permuted for PyTorch's NCW flatten; wf2: (128, 128)
    #      zero-padded to 128 logit lanes (first 2 columns are the real logits)
    # scratch (pooled activations only), rows ordered l*Bp + b:
    #   p1 (P1*Bp, 64)   p2 (P2*Bp, 128)   p3 (P3*Bp, 256)
    K = 3
    Lin = x_ref.shape[0] // Bp
    L1 = Lin - K + 1

    def pool2_store(c_val, dst_ref):
        # MaxPool1d(kernel=2, stride=2) applied to a conv-output *value*.
        # Rows are l*Bp + b, so every pooling pair is two contiguous, sublane-aligned
        # Bp-row blocks; a trailing odd position is dropped (PyTorch semantics).
        P = dst_ref.shape[0] // Bp
        for j in range(P):
            even = c_val[(2 * j) * Bp:(2 * j + 1) * Bp, :]
            odd = c_val[(2 * j + 1) * Bp:(2 * j + 2) * Bp, :]
            dst_ref[j * Bp:(j + 1) * Bp, :] = jnp.maximum(even, odd)

    # ---- conv1 (Cin=1): three broadcast taps on the VPU + bias + ReLU, fused pool ----
    rows1 = L1 * Bp
    c1 = (x_ref[0 * Bp:0 * Bp + rows1, :] * w1_ref[0:1, :]
          + x_ref[1 * Bp:1 * Bp + rows1, :] * w1_ref[1:2, :]
          + x_ref[2 * Bp:2 * Bp + rows1, :] * w1_ref[2:3, :]
          + b1_ref[...])
    pool2_store(jnp.maximum(c1, 0.0), p1_ref)

    def conv_pool(src_ref, w_ref, b_ref, dst_ref):
        # Merged-tap valid conv (stride 1): lane-concatenate the K shifted (rows, Cin)
        # slices into (rows, K*Cin) and hit the MXU once; bias + ReLU + 2:1 pool on the
        # value; only the pooled result is written back to VMEM.
        L_in = src_ref.shape[0] // Bp
        L_out = L_in - K + 1
        rows = L_out * Bp
        cols = jnp.concatenate(
            [src_ref[k * Bp:k * Bp + rows, :] for k in range(K)], axis=1)
        c = jnp.dot(cols, w_ref[...], preferred_element_type=jnp.float32) + b_ref[...]
        pool2_store(jnp.maximum(c, 0.0), dst_ref)

    conv_pool(p1_ref, w2_ref, b2_ref, p2_ref)   # conv2 + pool2
    conv_pool(p2_ref, w3_ref, b3_ref, p3_ref)   # conv3 + pool3

    # ---- MLP head: ReLU(flat @ Wf1 + b1) @ Wf2 + b2 (flatten built by one lane concat) ----
    P3 = p3_ref.shape[0] // Bp
    flat = jnp.concatenate(
        [p3_ref[j * Bp:(j + 1) * Bp, :] for j in range(P3)], axis=1)   # (Bp, P3*256)
    h = jnp.maximum(
        jnp.dot(flat, wf1_ref[...], preferred_element_type=jnp.float32) + bf1_ref[...],
        0.0)
    # TODO(synk): Dropout(0.5) treated as inference-mode identity (no RNG mask applied).
    out = jnp.dot(h, wf2_ref[...], preferred_element_type=jnp.float32) + bf2_ref[...]
    o_ref[...] = out.astype(o_ref.dtype)   # (Bp, 128): single unmasked lane-dense store


@functools.lru_cache(maxsize=None)
def _build_forward(Bp, Lin):
    K = 3
    L1 = Lin - K + 1
    P1 = L1 // 2
    L2 = P1 - K + 1
    P2 = L2 // 2
    L3 = P2 - K + 1
    P3 = L3 // 2
    C1, C2, C3 = 64, 128, 256
    HO = 128                                   # fc2 output lanes (padded from 2)
    vmem = pl.BlockSpec(memory_space=pltpu.MemorySpace.VMEM)
    return pl.pallas_call(
        functools.partial(_fused_forward_kernel, Bp),
        out_shape=jax.ShapeDtypeStruct((Bp, HO), jnp.float32),
        in_specs=[vmem] * 11,
        out_specs=vmem,
        scratch_shapes=[
            pltpu.VMEM((P1 * Bp, C1), jnp.float32),   # pool1 out
            pltpu.VMEM((P2 * Bp, C2), jnp.float32),   # pool2 out
            pltpu.VMEM((P3 * Bp, C3), jnp.float32),   # pool3 out
        ],
    )


def forward_pallas(x, q):
    """x: (B, L) f32; q: prepared (pre-permuted/padded) parameters -> (B, 2) logits."""
    B, Lin = x.shape
    Bp = ((B + 7) // 8) * 8                    # sublane-align the batch block
    xp = jnp.pad(x, ((0, Bp - B), (0, 0))) if Bp != B else x
    # Layout plumbing done OUTSIDE the kernel: row l*Bp + b holds x[b, l].
    x_col = xp.T.reshape(Lin * Bp, 1)
    call = _build_forward(Bp, Lin)
    out = call(x_col, q["w1"], q["b1"], q["w2"], q["b2"], q["w3"], q["b3"],
               q["wf1"], q["bf1"], q["wf2"], q["bf2"])
    return out[:B, :2]                         # drop batch padding + padded logit lanes


# ---------------------------------------------------------------------------
# One-time parameter layout prep (PyTorch-convention weights -> kernel layout).
# Done OUTSIDE the jitted forward so no transpose/reshape ops sit on the hot path.
# ---------------------------------------------------------------------------
def prepare_params(p):
    C3, H, HO = 256, 128, 128
    feat = p["fc1_w"].shape[1]
    Lp3 = feat // C3
    K = p["conv1_w"].shape[2]
    # conv (Cout, Cin, K) -> (K*Cin, Cout): row index k*Cin + cin matches the kernel's
    # lane-concatenated per-tap channel order.
    w1 = jnp.transpose(p["conv1_w"], (2, 1, 0)).reshape(K * 1, 64)
    w2 = jnp.transpose(p["conv2_w"], (2, 1, 0)).reshape(K * 64, 128)
    w3 = jnp.transpose(p["conv3_w"], (2, 1, 0)).reshape(K * 128, 256)
    # fc1: PyTorch flattens NCW (index c*Lp3 + l); kernel builds the flatten
    # channels-last (index l*C3 + c) -> permute fc1 columns once so results match.
    wf1 = p["fc1_w"].reshape(H, C3, Lp3).transpose(2, 1, 0).reshape(Lp3 * C3, H)
    # fc2: transpose and zero-pad to 128 output lanes for an unmasked final store.
    n_out = p["fc2_w"].shape[0]
    wf2 = jnp.zeros((H, HO), jnp.float32).at[:, :n_out].set(p["fc2_w"].T)
    bf2 = jnp.zeros((1, HO), jnp.float32).at[0, :n_out].set(p["fc2_b"])
    return {
        "w1": w1, "b1": p["conv1_b"].reshape(1, -1),
        "w2": w2, "b2": p["conv2_b"].reshape(1, -1),
        "w3": w3, "b3": p["conv3_b"].reshape(1, -1),
        "wf1": wf1, "bf1": p["fc1_b"].reshape(1, -1),
        "wf2": wf2, "bf2": bf2,
    }


# ---------------------------------------------------------------------------
# Pure-JAX reference (mirrors the PyTorch NCW forward exactly)
# ---------------------------------------------------------------------------
def forward_reference(x, p):
    hp = lax.Precision.HIGHEST

    def conv_relu_pool_ref(y, w, b):
        out = lax.conv_general_dilated(
            y, w, window_strides=(1,), padding="VALID",
            dimension_numbers=("NCH", "OIH", "NCH"), precision=hp)
        out = jnp.maximum(out + b[None, :, None], 0.0)
        B_, C_, L_ = out.shape
        Lp_ = L_ // 2
        return jnp.max(out[:, :, :2 * Lp_].reshape(B_, C_, Lp_, 2), axis=-1)

    y = x[:, None, :]
    y = conv_relu_pool_ref(y, p["conv1_w"], p["conv1_b"])
    y = conv_relu_pool_ref(y, p["conv2_w"], p["conv2_b"])
    y = conv_relu_pool_ref(y, p["conv3_w"], p["conv3_b"])
    flat = y.reshape(y.shape[0], -1)
    h = jnp.maximum(jnp.dot(flat, p["fc1_w"].T, precision=hp) + p["fc1_b"], 0.0)
    return jnp.dot(h, p["fc2_w"].T, precision=hp) + p["fc2_b"]


# ---------------------------------------------------------------------------
# Deterministic synthetic parameter init (PyTorch-convention shapes)
# ---------------------------------------------------------------------------
def init_params(key, input_length):
    L1 = (input_length - 2) // 2
    L2 = (L1 - 2) // 2
    L3 = (L2 - 2) // 2
    feat = L3 * 256
    ks = jax.random.split(key, 10)
    s = 0.2
    return {
        "conv1_w": s * jax.random.normal(ks[0], (64, 1, 3), jnp.float32),
        "conv1_b": s * jax.random.normal(ks[1], (64,), jnp.float32),
        "conv2_w": s * jax.random.normal(ks[2], (128, 64, 3), jnp.float32),
        "conv2_b": s * jax.random.normal(ks[3], (128,), jnp.float32),
        "conv3_w": s * jax.random.normal(ks[4], (256, 128, 3), jnp.float32),
        "conv3_b": s * jax.random.normal(ks[5], (256,), jnp.float32),
        "fc1_w": s * jax.random.normal(ks[6], (128, feat), jnp.float32),
        "fc1_b": s * jax.random.normal(ks[7], (128,), jnp.float32),
        "fc2_w": s * jax.random.normal(ks[8], (2, 128), jnp.float32),
        "fc2_b": s * jax.random.normal(ks[9], (2,), jnp.float32),
    }


if __name__ == "__main__":
    key = jax.random.PRNGKey(0)
    B, L = 4, 32                       # input_channels (sequence length) = 32
    kx, kp = jax.random.split(key)
    x = jax.random.normal(kx, (B, L), jnp.float32)
    params = init_params(kp, L)
    prepped = prepare_params(params)   # one-time weight layout prep (outside jit)

    fwd = jax.jit(forward_pallas)
    out = jax.block_until_ready(fwd(x, prepped))
    assert out.shape == (B, 2) and out.dtype == jnp.float32

    ref = forward_reference(x, params)
    np.testing.assert_allclose(np.asarray(out), np.asarray(ref), rtol=5e-2, atol=5e-2)

    print("KERNEL_OK")
</pallas_src>

<mosaic_0001>
module attributes {stable_mosaic.version = 11 : i64} {
  func.func @_fused_forward_kernel(%arg0: memref<256x1xf32, #tpu.memory_space<vmem>>, %arg1: memref<3x64xf32, #tpu.memory_space<vmem>>, %arg2: memref<1x64xf32, #tpu.memory_space<vmem>>, %arg3: memref<192x128xf32, #tpu.memory_space<vmem>>, %arg4: memref<1x128xf32, #tpu.memory_space<vmem>>, %arg5: memref<384x256xf32, #tpu.memory_space<vmem>>, %arg6: memref<1x256xf32, #tpu.memory_space<vmem>>, %arg7: memref<512x128xf32, #tpu.memory_space<vmem>>, %arg8: memref<1x128xf32, #tpu.memory_space<vmem>>, %arg9: memref<128x128xf32, #tpu.memory_space<vmem>>, %arg10: memref<1x128xf32, #tpu.memory_space<vmem>>, %arg11: memref<8x128xf32, #tpu.memory_space<vmem>>, %arg12: memref<120x64xf32, #tpu.memory_space<vmem>>, %arg13: memref<48x128xf32, #tpu.memory_space<vmem>>, %arg14: memref<16x256xf32, #tpu.memory_space<vmem>>) attributes {dimension_semantics = [], scalar_prefetch = 0 : i64, scratch_operands = 3 : i64, tpu.core_type = #tpu.core_type<tc>} {
    %c0 = arith.constant 0 : index
    %c0_0 = arith.constant 0 : index
    %0 = vector.load %arg0[%c0, %c0_0] : memref<256x1xf32, #tpu.memory_space<vmem>>, vector<240x1xf32>
    %c0_1 = arith.constant 0 : index
    %c0_2 = arith.constant 0 : index
    %1 = vector.load %arg1[%c0_1, %c0_2] : memref<3x64xf32, #tpu.memory_space<vmem>>, vector<1x64xf32>
    %2 = vector.broadcast %0 : vector<240x1xf32> to vector<240x64xf32>
    %3 = vector.broadcast %1 : vector<1x64xf32> to vector<240x64xf32>
    %4 = arith.mulf %2, %3 : vector<240x64xf32>
    %c8 = arith.constant 8 : index
    %c0_3 = arith.constant 0 : index
    %5 = vector.load %arg0[%c8, %c0_3] : memref<256x1xf32, #tpu.memory_space<vmem>>, vector<240x1xf32>
    %c1 = arith.constant 1 : index
    %c0_4 = arith.constant 0 : index
    %6 = vector.load %arg1[%c1, %c0_4] : memref<3x64xf32, #tpu.memory_space<vmem>>, vector<1x64xf32>
    %7 = vector.broadcast %5 : vector<240x1xf32> to vector<240x64xf32>
    %8 = vector.broadcast %6 : vector<1x64xf32> to vector<240x64xf32>
    %9 = arith.mulf %7, %8 : vector<240x64xf32>
    %10 = arith.addf %4, %9 : vector<240x64xf32>
    %c16 = arith.constant 16 : index
    %c0_5 = arith.constant 0 : index
    %11 = vector.load %arg0[%c16, %c0_5] : memref<256x1xf32, #tpu.memory_space<vmem>>, vector<240x1xf32>
    %c2 = arith.constant 2 : index
    %c0_6 = arith.constant 0 : index
    %12 = vector.load %arg1[%c2, %c0_6] : memref<3x64xf32, #tpu.memory_space<vmem>>, vector<1x64xf32>
    %13 = vector.broadcast %11 : vector<240x1xf32> to vector<240x64xf32>
    %14 = vector.broadcast %12 : vector<1x64xf32> to vector<240x64xf32>
    %15 = arith.mulf %13, %14 : vector<240x64xf32>
    %16 = arith.addf %10, %15 : vector<240x64xf32>
    %c0_7 = arith.constant 0 : index
    %c0_8 = arith.constant 0 : index
    %17 = vector.load %arg2[%c0_7, %c0_8] : memref<1x64xf32, #tpu.memory_space<vmem>>, vector<1x64xf32>
    %18 = vector.broadcast %17 : vector<1x64xf32> to vector<240x64xf32>
    %19 = arith.addf %16, %18 : vector<240x64xf32>
    %cst = arith.constant 0.000000e+00 : f32
    %20 = vector.broadcast %cst : f32 to vector<240x64xf32>
    %21 = arith.maximumf %19, %20 : vector<240x64xf32>
    %22 = vector.extract_strided_slice %21 {offsets = [0, 0], sizes = [8, 64], strides = [1, 1]} : vector<240x64xf32> to vector<8x64xf32>
    %23 = vector.extract_strided_slice %21 {offsets = [8, 0], sizes = [8, 64], strides = [1, 1]} : vector<240x64xf32> to vector<8x64xf32>
    %24 = arith.maximumf %22, %23 : vector<8x64xf32>
    %c0_9 = arith.constant 0 : index
    %c0_10 = arith.constant 0 : index
    %25 = vector.load %arg12[%c0_9, %c0_10] : memref<120x64xf32, #tpu.memory_space<vmem>>, vector<8x64xf32>
    tpu.vector_store %arg12[%c0_9, %c0_10], %24 {strides = array<i32>} : memref<120x64xf32, #tpu.memory_space<vmem>>, vector<8x64xf32>,
    %26 = vector.extract_strided_slice %21 {offsets = [16, 0], sizes = [8, 64], strides = [1, 1]} : vector<240x64xf32> to vector<8x64xf32>
    %27 = vector.extract_strided_slice %21 {offsets = [24, 0], sizes = [8, 64], strides = [1, 1]} : vector<240x64xf32> to vector<8x64xf32>
    %28 = arith.maximumf %26, %27 : vector<8x64xf32>
    %c8_11 = arith.constant 8 : index
    %c0_12 = arith.constant 0 : index
    %29 = vector.load %arg12[%c8_11, %c0_12] : memref<120x64xf32, #tpu.memory_space<vmem>>, vector<8x64xf32>
    tpu.vector_store %arg12[%c8_11, %c0_12], %28 {strides = array<i32>} : memref<120x64xf32, #tpu.memory_space<vmem>>, vector<8x64xf32>,
    %30 = vector.extract_strided_slice %21 {offsets = [32, 0], sizes = [8, 64], strides = [1, 1]} : vector<240x64xf32> to vector<8x64xf32>
    %31 = vector.extract_strided_slice %21 {offsets = [40, 0], sizes = [8, 64], strides = [1, 1]} : vector<240x64xf32> to vector<8x64xf32>
    %32 = arith.maximumf %30, %31 : vector<8x64xf32>
    %c16_13 = arith.constant 16 : index
    %c0_14 = arith.constant 0 : index
    %33 = vector.load %arg12[%c16_13, %c0_14] : memref<120x64xf32, #tpu.memory_space<vmem>>, vector<8x64xf32>
    tpu.vector_store %arg12[%c16_13, %c0_14], %32 {strides = array<i32>} : memref<120x64xf32, #tpu.memory_space<vmem>>, vector<8x64xf32>,
    %34 = vector.extract_strided_slice %21 {offsets = [48, 0], sizes = [8, 64], strides = [1, 1]} : vector<240x64xf32> to vector<8x64xf32>
    %35 = vector.extract_strided_slice %21 {offsets = [56, 0], sizes = [8, 64], strides = [1, 1]} : vector<240x64xf32> to vector<8x64xf32>
    %36 = arith.maximumf %34, %35 : vector<8x64xf32>
    %c24 = arith.constant 24 : index
    %c0_15 = arith.constant 0 : index
    %37 = vector.load %arg12[%c24, %c0_15] : memref<120x64xf32, #tpu.memory_space<vmem>>, vector<8x64xf32>
    tpu.vector_store %arg12[%c24, %c0_15], %36 {strides = array<i32>} : memref<120x64xf32, #tpu.memory_space<vmem>>, vector<8x64xf32>,
    %38 = vector.extract_strided_slice %21 {offsets = [64, 0], sizes = [8, 64], strides = [1, 1]} : vector<240x64xf32> to vector<8x64xf32>
    %39 = vector.extract_strided_slice %21 {offsets = [72, 0], sizes = [8, 64], strides = [1, 1]} : vector<240x64xf32> to vector<8x64xf32>
    %40 = arith.maximumf %38, %39 : vector<8x64xf32>
    %c32 = arith.constant 32 : index
    %c0_16 = arith.constant 0 : index
    %41 = vector.load %arg12[%c32, %c0_16] : memref<120x64xf32, #tpu.memory_space<vmem>>, vector<8x64xf32>
    tpu.vector_store %arg12[%c32, %c0_16], %40 {strides = array<i32>} : memref<120x64xf32, #tpu.memory_space<vmem>>, vector<8x64xf32>,
    %42 = vector.extract_strided_slice %21 {offsets = [80, 0], sizes = [8, 64], strides = [1, 1]} : vector<240x64xf32> to vector<8x64xf32>
    %43 = vector.extract_strided_slice %21 {offsets = [88, 0], sizes = [8, 64], strides = [1, 1]} : vector<240x64xf32> to vector<8x64xf32>
    %44 = arith.maximumf %42, %43 : vector<8x64xf32>
    %c40 = arith.constant 40 : index
    %c0_17 = arith.constant 0 : index
    %45 = vector.load %arg12[%c40, %c0_17] : memref<120x64xf32, #tpu.memory_space<vmem>>, vector<8x64xf32>
    tpu.vector_store %arg12[%c40, %c0_17], %44 {strides = array<i32>} : memref<120x64xf32, #tpu.memory_space<vmem>>, vector<8x64xf32>,
    %46 = vector.extract_strided_slice %21 {offsets = [96, 0], sizes = [8, 64], strides = [1, 1]} : vector<240x64xf32> to vector<8x64xf32>
    %47 = vector.extract_strided_slice %21 {offsets = [104, 0], sizes = [8, 64], strides = [1, 1]} : vector<240x64xf32> to vector<8x64xf32>
    %48 = arith.maximumf %46, %47 : vector<8x64xf32>
    %c48 = arith.constant 48 : index
    %c0_18 = arith.constant 0 : index
    %49 = vector.load %arg12[%c48, %c0_18] : memref<120x64xf32, #tpu.memory_space<vmem>>, vector<8x64xf32>
    tpu.vector_store %arg12[%c48, %c0_18], %48 {strides = array<i32>} : memref<120x64xf32, #tpu.memory_space<vmem>>, vector<8x64xf32>,
    %50 = vector.extract_strided_slice %21 {offsets = [112, 0], sizes = [8, 64], strides = [1, 1]} : vector<240x64xf32> to vector<8x64xf32>
    %51 = vector.extract_strided_slice %21 {offsets = [120, 0], sizes = [8, 64], strides = [1, 1]} : vector<240x64xf32> to vector<8x64xf32>
    %52 = arith.maximumf %50, %51 : vector<8x64xf32>
    %c56 = arith.constant 56 : index
    %c0_19 = arith.constant 0 : index
    %53 = vector.load %arg12[%c56, %c0_19] : memref<120x64xf32, #tpu.memory_space<vmem>>, vector<8x64xf32>
    tpu.vector_store %arg12[%c56, %c0_19], %52 {strides = array<i32>} : memref<120x64xf32, #tpu.memory_space<vmem>>, vector<8x64xf32>,
    %54 = vector.extract_strided_slice %21 {offsets = [128, 0], sizes = [8, 64], strides = [1, 1]} : vector<240x64xf32> to vector<8x64xf32>
    %55 = vector.extract_strided_slice %21 {offsets = [136, 0], sizes = [8, 64], strides = [1, 1]} : vector<240x64xf32> to vector<8x64xf32>
    %56 = arith.maximumf %54, %55 : vector<8x64xf32>
    %c64 = arith.constant 64 : index
    %c0_20 = arith.constant 0 : index
    %57 = vector.load %arg12[%c64, %c0_20] : memref<120x64xf32, #tpu.memory_space<vmem>>, vector<8x64xf32>
    tpu.vector_store %arg12[%c64, %c0_20], %56 {strides = array<i32>} : memref<120x64xf32, #tpu.memory_space<vmem>>, vector<8x64xf32>,
    %58 = vector.extract_strided_slice %21 {offsets = [144, 0], sizes = [8, 64], strides = [1, 1]} : vector<240x64xf32> to vector<8x64xf32>
    %59 = vector.extract_strided_slice %21 {offsets = [152, 0], sizes = [8, 64], strides = [1, 1]} : vector<240x64xf32> to vector<8x64xf32>
    %60 = arith.maximumf %58, %59 : vector<8x64xf32>
    %c72 = arith.constant 72 : index
    %c0_21 = arith.constant 0 : index
    %61 = vector.load %arg12[%c72, %c0_21] : memref<120x64xf32, #tpu.memory_space<vmem>>, vector<8x64xf32>
    tpu.vector_store %arg12[%c72, %c0_21], %60 {strides = array<i32>} : memref<120x64xf32, #tpu.memory_space<vmem>>, vector<8x64xf32>,
    %62 = vector.extract_strided_slice %21 {offsets = [160, 0], sizes = [8, 64], strides = [1, 1]} : vector<240x64xf32> to vector<8x64xf32>
    %63 = vector.extract_strided_slice %21 {offsets = [168, 0], sizes = [8, 64], strides = [1, 1]} : vector<240x64xf32> to vector<8x64xf32>
    %64 = arith.maximumf %62, %63 : vector<8x64xf32>
    %c80 = arith.constant 80 : index
    %c0_22 = arith.constant 0 : index
    %65 = vector.load %arg12[%c80, %c0_22] : memref<120x64xf32, #tpu.memory_space<vmem>>, vector<8x64xf32>
    tpu.vector_store %arg12[%c80, %c0_22], %64 {strides = array<i32>} : memref<120x64xf32, #tpu.memory_space<vmem>>, vector<8x64xf32>,
    %66 = vector.extract_strided_slice %21 {offsets = [176, 0], sizes = [8, 64], strides = [1, 1]} : vector<240x64xf32> to vector<8x64xf32>
    %67 = vector.extract_strided_slice %21 {offsets = [184, 0], sizes = [8, 64], strides = [1, 1]} : vector<240x64xf32> to vector<8x64xf32>
    %68 = arith.maximumf %66, %67 : vector<8x64xf32>
    %c88 = arith.constant 88 : index
    %c0_23 = arith.constant 0 : index
    %69 = vector.load %arg12[%c88, %c0_23] : memref<120x64xf32, #tpu.memory_space<vmem>>, vector<8x64xf32>
    tpu.vector_store %arg12[%c88, %c0_23], %68 {strides = array<i32>} : memref<120x64xf32, #tpu.memory_space<vmem>>, vector<8x64xf32>,
    %70 = vector.extract_strided_slice %21 {offsets = [192, 0], sizes = [8, 64], strides = [1, 1]} : vector<240x64xf32> to vector<8x64xf32>
    %71 = vector.extract_strided_slice %21 {offsets = [200, 0], sizes = [8, 64], strides = [1, 1]} : vector<240x64xf32> to vector<8x64xf32>
    %72 = arith.maximumf %70, %71 : vector<8x64xf32>
    %c96 = arith.constant 96 : index
    %c0_24 = arith.constant 0 : index
    %73 = vector.load %arg12[%c96, %c0_24] : memref<120x64xf32, #tpu.memory_space<vmem>>, vector<8x64xf32>
    tpu.vector_store %arg12[%c96, %c0_24], %72 {strides = array<i32>} : memref<120x64xf32, #tpu.memory_space<vmem>>, vector<8x64xf32>,
    %74 = vector.extract_strided_slice %21 {offsets = [208, 0], sizes = [8, 64], strides = [1, 1]} : vector<240x64xf32> to vector<8x64xf32>
    %75 = vector.extract_strided_slice %21 {offsets = [216, 0], sizes = [8, 64], strides = [1, 1]} : vector<240x64xf32> to vector<8x64xf32>
    %76 = arith.maximumf %74, %75 : vector<8x64xf32>
    %c104 = arith.constant 104 : index
    %c0_25 = arith.constant 0 : index
    %77 = vector.load %arg12[%c104, %c0_25] : memref<120x64xf32, #tpu.memory_space<vmem>>, vector<8x64xf32>
    tpu.vector_store %arg12[%c104, %c0_25], %76 {strides = array<i32>} : memref<120x64xf32, #tpu.memory_space<vmem>>, vector<8x64xf32>,
    %78 = vector.extract_strided_slice %21 {offsets = [224, 0], sizes = [8, 64], strides = [1, 1]} : vector<240x64xf32> to vector<8x64xf32>
    %79 = vector.extract_strided_slice %21 {offsets = [232, 0], sizes = [8, 64], strides = [1, 1]} : vector<240x64xf32> to vector<8x64xf32>
    %80 = arith.maximumf %78, %79 : vector<8x64xf32>
    %c112 = arith.constant 112 : index
    %c0_26 = arith.constant 0 : index
    %81 = vector.load %arg12[%c112, %c0_26] : memref<120x64xf32, #tpu.memory_space<vmem>>, vector<8x64xf32>
    tpu.vector_store %arg12[%c112, %c0_26], %80 {strides = array<i32>} : memref<120x64xf32, #tpu.memory_space<vmem>>, vector<8x64xf32>,
    %c0_27 = arith.constant 0 : index
    %c0_28 = arith.constant 0 : index
    %82 = vector.load %arg12[%c0_27, %c0_28] : memref<120x64xf32, #tpu.memory_space<vmem>>, vector<104x64xf32>
    %c8_29 = arith.constant 8 : index
    %c0_30 = arith.constant 0 : index
    %83 = vector.load %arg12[%c8_29, %c0_30] : memref<120x64xf32, #tpu.memory_space<vmem>>, vector<104x64xf32>
    %c16_31 = arith.constant 16 : index
    %c0_32 = arith.constant 0 : index
    %84 = vector.load %arg12[%c16_31, %c0_32] : memref<120x64xf32, #tpu.memory_space<vmem>>, vector<104x64xf32>
    %85 = tpu.concatenate %82, %83, %84 in 1 : vector<104x64xf32>, vector<104x64xf32>, vector<104x64xf32> -> vector<104x192xf32>
    %c0_33 = arith.constant 0 : index
    %c0_34 = arith.constant 0 : index
    %86 = vector.load %arg3[%c0_33, %c0_34] : memref<192x128xf32, #tpu.memory_space<vmem>>, vector<192x128xf32>
    %cst_35 = arith.constant dense<0.000000e+00> : vector<104x128xf32>
    %87 = tpu.matmul %85, %86, %cst_35 {dimension_numbers = #tpu.dot_dimension_numbers<[1], [0], [0], [1], [0, 0, 1, 1], [], []>} : vector<104x192xf32>, vector<192x128xf32>, vector<104x128xf32> -> vector<104x128xf32>
    %c0_36 = arith.constant 0 : index
    %c0_37 = arith.constant 0 : index
    %88 = vector.load %arg4[%c0_36, %c0_37] : memref<1x128xf32, #tpu.memory_space<vmem>>, vector<1x128xf32>
    %89 = vector.broadcast %88 : vector<1x128xf32> to vector<104x128xf32>
    %90 = arith.addf %87, %89 : vector<104x128xf32>
    %cst_38 = arith.constant 0.000000e+00 : f32
    %91 = vector.broadcast %cst_38 : f32 to vector<104x128xf32>
    %92 = arith.maximumf %90, %91 : vector<104x128xf32>
    %93 = vector.extract_strided_slice %92 {offsets = [0, 0], sizes = [8, 128], strides = [1, 1]} : vector<104x128xf32> to vector<8x128xf32>
    %94 = vector.extract_strided_slice %92 {offsets = [8, 0], sizes = [8, 128], strides = [1, 1]} : vector<104x128xf32> to vector<8x128xf32>
    %95 = arith.maximumf %93, %94 : vector<8x128xf32>
    %c0_39 = arith.constant 0 : index
    %c0_40 = arith.constant 0 : index
    %96 = vector.load %arg13[%c0_39, %c0_40] : memref<48x128xf32, #tpu.memory_space<vmem>>, vector<8x128xf32>
    tpu.vector_store %arg13[%c0_39, %c0_40], %95 {strides = array<i32>} : memref<48x128xf32, #tpu.memory_space<vmem>>, vector<8x128xf32>,
    %97 = vector.extract_strided_slice %92 {offsets = [16, 0], sizes = [8, 128], strides = [1, 1]} : vector<104x128xf32> to vector<8x128xf32>
    %98 = vector.extract_strided_slice %92 {offsets = [24, 0], sizes = [8, 128], strides = [1, 1]} : vector<104x128xf32> to vector<8x128xf32>
    %99 = arith.maximumf %97, %98 : vector<8x128xf32>
    %c8_41 = arith.constant 8 : index
    %c0_42 = arith.constant 0 : index
    %100 = vector.load %arg13[%c8_41, %c0_42] : memref<48x128xf32, #tpu.memory_space<vmem>>, vector<8x128xf32>
    tpu.vector_store %arg13[%c8_41, %c0_42], %99 {strides = array<i32>} : memref<48x128xf32, #tpu.memory_space<vmem>>, vector<8x128xf32>,
    %101 = vector.extract_strided_slice %92 {offsets = [32, 0], sizes = [8, 128], strides = [1, 1]} : vector<104x128xf32> to vector<8x128xf32>
    %102 = vector.extract_strided_slice %92 {offsets = [40, 0], sizes = [8, 128], strides = [1, 1]} : vector<104x128xf32> to vector<8x128xf32>
    %103 = arith.maximumf %101, %102 : vector<8x128xf32>
    %c16_43 = arith.constant 16 : index
    %c0_44 = arith.constant 0 : index
    %104 = vector.load %arg13[%c16_43, %c0_44] : memref<48x128xf32, #tpu.memory_space<vmem>>, vector<8x128xf32>
    tpu.vector_store %arg13[%c16_43, %c0_44], %103 {strides = array<i32>} : memref<48x128xf32, #tpu.memory_space<vmem>>, vector<8x128xf32>,
    %105 = vector.extract_strided_slice %92 {offsets = [48, 0], sizes = [8, 128], strides = [1, 1]} : vector<104x128xf32> to vector<8x128xf32>
    %106 = vector.extract_strided_slice %92 {offsets = [56, 0], sizes = [8, 128], strides = [1, 1]} : vector<104x128xf32> to vector<8x128xf32>
    %107 = arith.maximumf %105, %106 : vector<8x128xf32>
    %c24_45 = arith.constant 24 : index
    %c0_46 = arith.constant 0 : index
    %108 = vector.load %arg13[%c24_45, %c0_46] : memref<48x128xf32, #tpu.memory_space<vmem>>, vector<8x128xf32>
    tpu.vector_store %arg13[%c24_45, %c0_46], %107 {strides = array<i32>} : memref<48x128xf32, #tpu.memory_space<vmem>>, vector<8x128xf32>,
    %109 = vector.extract_strided_slice %92 {offsets = [64, 0], sizes = [8, 128], strides = [1, 1]} : vector<104x128xf32> to vector<8x128xf32>
    %110 = vector.extract_strided_slice %92 {offsets = [72, 0], sizes = [8, 128], strides = [1, 1]} : vector<104x128xf32> to vector<8x128xf32>
    %111 = arith.maximumf %109, %110 : vector<8x128xf32>
    %c32_47 = arith.constant 32 : index
    %c0_48 = arith.constant 0 : index
    %112 = vector.load %arg13[%c32_47, %c0_48] : memref<48x128xf32, #tpu.memory_space<vmem>>, vector<8x128xf32>
    tpu.vector_store %arg13[%c32_47, %c0_48], %111 {strides = array<i32>} : memref<48x128xf32, #tpu.memory_space<vmem>>, vector<8x128xf32>,
    %113 = vector.extract_strided_slice %92 {offsets = [80, 0], sizes = [8, 128], strides = [1, 1]} : vector<104x128xf32> to vector<8x128xf32>
    %114 = vector.extract_strided_slice %92 {offsets = [88, 0], sizes = [8, 128], strides = [1, 1]} : vector<104x128xf32> to vector<8x128xf32>
    %115 = arith.maximumf %113, %114 : vector<8x128xf32>
    %c40_49 = arith.constant 40 : index
    %c0_50 = arith.constant 0 : index
    %116 = vector.load %arg13[%c40_49, %c0_50] : memref<48x128xf32, #tpu.memory_space<vmem>>, vector<8x128xf32>
    tpu.vector_store %arg13[%c40_49, %c0_50], %115 {strides = array<i32>} : memref<48x128xf32, #tpu.memory_space<vmem>>, vector<8x128xf32>,
    %c0_51 = arith.constant 0 : index
    %c0_52 = arith.constant 0 : index
    %117 = vector.load %arg13[%c0_51, %c0_52] : memref<48x128xf32, #tpu.memory_space<vmem>>, vector<32x128xf32>
    %c8_53 = arith.constant 8 : index
    %c0_54 = arith.constant 0 : index
    %118 = vector.load %arg13[%c8_53, %c0_54] : memref<48x128xf32, #tpu.memory_space<vmem>>, vector<32x128xf32>
    %c16_55 = arith.constant 16 : index
    %c0_56 = arith.constant 0 : index
    %119 = vector.load %arg13[%c16_55, %c0_56] : memref<48x128xf32, #tpu.memory_space<vmem>>, vector<32x128xf32>
    %120 = tpu.concatenate %117, %118, %119 in 1 : vector<32x128xf32>, vector<32x128xf32>, vector<32x128xf32> -> vector<32x384xf32>
    %c0_57 = arith.constant 0 : index
    %c0_58 = arith.constant 0 : index
    %121 = vector.load %arg5[%c0_57, %c0_58] : memref<384x256xf32, #tpu.memory_space<vmem>>, vector<384x256xf32>
    %cst_59 = arith.constant dense<0.000000e+00> : vector<32x256xf32>
    %122 = tpu.matmul %120, %121, %cst_59 {dimension_numbers = #tpu.dot_dimension_numbers<[1], [0], [0], [1], [0, 0, 1, 1], [], []>} : vector<32x384xf32>, vector<384x256xf32>, vector<32x256xf32> -> vector<32x256xf32>
    %c0_60 = arith.constant 0 : index
    %c0_61 = arith.constant 0 : index
    %123 = vector.load %arg6[%c0_60, %c0_61] : memref<1x256xf32, #tpu.memory_space<vmem>>, vector<1x256xf32>
    %124 = vector.broadcast %123 : vector<1x256xf32> to vector<32x256xf32>
    %125 = arith.addf %122, %124 : vector<32x256xf32>
    %cst_62 = arith.constant 0.000000e+00 : f32
    %126 = vector.broadcast %cst_62 : f32 to vector<32x256xf32>
    %127 = arith.maximumf %125, %126 : vector<32x256xf32>
    %128 = vector.extract_strided_slice %127 {offsets = [0, 0], sizes = [8, 256], strides = [1, 1]} : vector<32x256xf32> to vector<8x256xf32>
    %129 = vector.extract_strided_slice %127 {offsets = [8, 0], sizes = [8, 256], strides = [1, 1]} : vector<32x256xf32> to vector<8x256xf32>
    %130 = arith.maximumf %128, %129 : vector<8x256xf32>
    %c0_63 = arith.constant 0 : index
    %c0_64 = arith.constant 0 : index
    %131 = vector.load %arg14[%c0_63, %c0_64] : memref<16x256xf32, #tpu.memory_space<vmem>>, vector<8x256xf32>
    tpu.vector_store %arg14[%c0_63, %c0_64], %130 {strides = array<i32>} : memref<16x256xf32, #tpu.memory_space<vmem>>, vector<8x256xf32>,
    %132 = vector.extract_strided_slice %127 {offsets = [16, 0], sizes = [8, 256], strides = [1, 1]} : vector<32x256xf32> to vector<8x256xf32>
    %133 = vector.extract_strided_slice %127 {offsets = [24, 0], sizes = [8, 256], strides = [1, 1]} : vector<32x256xf32> to vector<8x256xf32>
    %134 = arith.maximumf %132, %133 : vector<8x256xf32>
    %c8_65 = arith.constant 8 : index
    %c0_66 = arith.constant 0 : index
    %135 = vector.load %arg14[%c8_65, %c0_66] : memref<16x256xf32, #tpu.memory_space<vmem>>, vector<8x256xf32>
    tpu.vector_store %arg14[%c8_65, %c0_66], %134 {strides = array<i32>} : memref<16x256xf32, #tpu.memory_space<vmem>>, vector<8x256xf32>,
    %c0_67 = arith.constant 0 : index
    %c0_68 = arith.constant 0 : index
    %136 = vector.load %arg14[%c0_67, %c0_68] : memref<16x256xf32, #tpu.memory_space<vmem>>, vector<8x256xf32>
    %c8_69 = arith.constant 8 : index
    %c0_70 = arith.constant 0 : index
    %137 = vector.load %arg14[%c8_69, %c0_70] : memref<16x256xf32, #tpu.memory_space<vmem>>, vector<8x256xf32>
    %138 = tpu.concatenate %136, %137 in 1 : vector<8x256xf32>, vector<8x256xf32> -> vector<8x512xf32>
    %c0_71 = arith.constant 0 : index
    %c0_72 = arith.constant 0 : index
    %139 = vector.load %arg7[%c0_71, %c0_72] : memref<512x128xf32, #tpu.memory_space<vmem>>, vector<512x128xf32>
    %cst_73 = arith.constant dense<0.000000e+00> : vector<8x128xf32>
    %140 = tpu.matmul %138, %139, %cst_73 {dimension_numbers = #tpu.dot_dimension_numbers<[1], [0], [0], [1], [0, 0, 1, 1], [], []>} : vector<8x512xf32>, vector<512x128xf32>, vector<8x128xf32> -> vector<8x128xf32>
    %c0_74 = arith.constant 0 : index
    %c0_75 = arith.constant 0 : index
    %141 = vector.load %arg8[%c0_74, %c0_75] : memref<1x128xf32, #tpu.memory_space<vmem>>, vector<1x128xf32>
    %142 = vector.broadcast %141 : vector<1x128xf32> to vector<8x128xf32>
    %143 = arith.addf %140, %142 : vector<8x128xf32>
    %cst_76 = arith.constant 0.000000e+00 : f32
    %144 = vector.broadcast %cst_76 : f32 to vector<8x128xf32>
    %145 = arith.maximumf %143, %144 : vector<8x128xf32>
    %c0_77 = arith.constant 0 : index
    %c0_78 = arith.constant 0 : index
    %146 = vector.load %arg9[%c0_77, %c0_78] : memref<128x128xf32, #tpu.memory_space<vmem>>, vector<128x128xf32>
    %cst_79 = arith.constant dense<0.000000e+00> : vector<8x128xf32>
    %147 = tpu.matmul %145, %146, %cst_79 {dimension_numbers = #tpu.dot_dimension_numbers<[1], [0], [0], [1], [0, 0, 1, 1], [], []>} : vector<8x128xf32>, vector<128x128xf32>, vector<8x128xf32> -> vector<8x128xf32>
    %c0_80 = arith.constant 0 : index
    %c0_81 = arith.constant 0 : index
    %148 = vector.load %arg10[%c0_80, %c0_81] : memref<1x128xf32, #tpu.memory_space<vmem>>, vector<1x128xf32>
    %149 = vector.broadcast %148 : vector<1x128xf32> to vector<8x128xf32>
    %150 = arith.addf %147, %149 : vector<8x128xf32>
    %c0_82 = arith.constant 0 : index
    %c0_83 = arith.constant 0 : index
    %151 = vector.load %arg11[%c0_82, %c0_83] : memref<8x128xf32, #tpu.memory_space<vmem>>, vector<8x128xf32>
    tpu.vector_store %arg11[%c0_82, %c0_83], %150 {strides = array<i32>} : memref<8x128xf32, #tpu.memory_space<vmem>>, vector<8x128xf32>,
    return
  }
}

</mosaic_0001>

<llo_original>
// kernel: forward_pallas.1
$region0: #{forward_pallas.1}
  #allocation0 [shape = 'u32[]', space=smem, size = 0x4, offset = 0x4, fixed_abs, tag = 'smem constant byte address 0x4 - core index']
  #allocation1 [shape = 'u32[72,128]{1,0:T(1,128)}', space=vmem, size = 0x9000, scoped, tag = 'internal scratch']
  #allocation2 [shape = 'f32[120,64]{1,0:T(8,128)}', space=vmem, size = 0xf000, scoped, tag = 'scratch operand']
  #allocation3 [shape = 'f32[48,128]{1,0:T(8,128)}', space=vmem, size = 0x6000, scoped, tag = 'scratch operand']
  #allocation4 [shape = 'f32[16,256]{1,0:T(8,128)}', space=vmem, size = 0x4000, scoped, tag = 'scratch operand']
  %s0 = inlined_call_operand.vmem [shape: f32[256,1], index: 0, kind: input, shape index: {}]
  %s1 = inlined_call_operand.vmem [shape: f32[3,64], index: 1, kind: input, shape index: {}]
  %s2 = inlined_call_operand.vmem [shape: f32[1,64], index: 2, kind: input, shape index: {}]
  %s3 = inlined_call_operand.vmem [shape: f32[192,128], index: 3, kind: input, shape index: {}]
  %s4 = inlined_call_operand.vmem [shape: f32[1,128], index: 4, kind: input, shape index: {}]
  %s5 = inlined_call_operand.hbm [shape: f32[384,256], index: 5, kind: input, shape index: {}]
  %s6 = inlined_call_operand.vmem [shape: f32[1,256], index: 6, kind: input, shape index: {}]
  %s7 = inlined_call_operand.hbm [shape: f32[512,128], index: 7, kind: input, shape index: {}]
  %s8 = inlined_call_operand.vmem [shape: f32[1,128], index: 8, kind: input, shape index: {}]
  %s9 = inlined_call_operand.vmem [shape: f32[128,128], index: 9, kind: input, shape index: {}]
  %s10 = inlined_call_operand.vmem [shape: f32[1,128], index: 10, kind: input, shape index: {}]
  %s11 = inlined_call_operand.vmem [shape: f32[8,128], index: 11, kind: output, shape index: {}]
  %s12 = sld [smem:[#allocation0]]
  $region62: #{forward_pallas.1} parent=0
    _
  %s14 = ssub.s32 1, %s12
  %s15 = scalar_select 0, %s14, %s12
  $region1: #{forward_pallas.1} parent=0
    #allocation5 [shape = 'u8[393216]{0}', space=vmem, size = 0x60000, scoped, tag = 'input window, operand 5, single buffered']
    #allocation6 [shape = 's32[1]{0}', space=sflag, size = 0x4, scoped, tag = 'scoped memory for forward_pallas.1']
    #allocation7 [shape = 'u8[262144]{0}', space=vmem, size = 0x40000, scoped, tag = 'input window, operand 7, single buffered']
    #allocation8 [shape = 's32[1]{0}', space=sflag, size = 0x4, scoped, tag = 'scoped memory for forward_pallas.1']
    %16 = vsyncpa [#allocation6], 0
    %17 = vsyncpa [#allocation8], 0
    // Predicated region
    $region2: #{forward_pallas.1} parent=1 // pred_check
      _
    $region3: #{forward_pallas.1} parent=1 // pred_check_branch
      %19 = sbr.rel (0) target = $region5
    $region4: #{forward_pallas.1} parent=1 // pred_region
      _
    $region5: #{forward_pallas.1} parent=1 // pred_fallthru
      _
    // Predicated region
    $region6: #{forward_pallas.1} parent=1 // pred_check
      _
    $region7: #{forward_pallas.1} parent=1 // pred_check_branch
      %21 = sbr.rel (0) target = $region9
    $region8: #{forward_pallas.1} parent=1 // pred_region
      _
    $region9: #{forward_pallas.1} parent=1 // pred_fallthru
      _
    // Predicated region
    $region10: #{forward_pallas.1} parent=1 // pred_check
      _
    $region11: #{forward_pallas.1} parent=1 // pred_check_branch
      %23 = sbr.rel (0) target = $region13
    $region12: #{forward_pallas.1} parent=1 // pred_region
      _
    $region13: #{forward_pallas.1} parent=1 // pred_fallthru
      _
    // Predicated region
    $region14: #{forward_pallas.1} parent=1 // pred_check
      _
    $region15: #{forward_pallas.1} parent=1 // pred_check_branch
      %25 = sbr.rel (0) target = $region17
    $region16: #{forward_pallas.1} parent=1 // pred_region
      _
    $region17: #{forward_pallas.1} parent=1 // pred_fallthru
      _
    // Predicated region
    $region18: #{forward_pallas.1} parent=1 // pred_check
      _
    $region19: #{forward_pallas.1} parent=1 // pred_check_branch
      %27 = sbr.rel (0) target = $region21
    $region20: #{forward_pallas.1} parent=1 // pred_region
      _
    $region21: #{forward_pallas.1} parent=1 // pred_fallthru
      _
    // Predicated region
    $region22: #{forward_pallas.1} parent=1 // pred_check
      _
    $region23: #{forward_pallas.1} parent=1 // pred_check_branch
      %29 = sbr.rel (0) target = $region25
    $region24: #{forward_pallas.1} parent=1 // pred_region
      %31 = vsyncadd [#allocation6], 0
      %s32 = sshll.u32 %s5, 4
      %s33 = int_to_ptr.hbm [resolvable:$true] %s32
      %s34 = sshll.u32 [#allocation5], 4
      %s35 = int_to_ptr.vmem [resolvable:$true] %s34
      %40 = dma.hbm_to_vmem [thread:$0]  %s33, 12288, %s35, [#allocation6], 256, 256, 16
    $region25: #{forward_pallas.1} parent=1 // pred_fallthru
      _
    // Predicated region
    $region26: #{forward_pallas.1} parent=1 // pred_check
      _
    $region27: #{forward_pallas.1} parent=1 // pred_check_branch
      %42 = sbr.rel (0) target = $region29
    $region28: #{forward_pallas.1} parent=1 // pred_region
      _
    $region29: #{forward_pallas.1} parent=1 // pred_fallthru
      _
    // Predicated region
    $region30: #{forward_pallas.1} parent=1 // pred_check
      _
    $region31: #{forward_pallas.1} parent=1 // pred_check_branch
      %44 = sbr.rel (0) target = $region33
    $region32: #{forward_pallas.1} parent=1 // pred_region
      %46 = vsyncadd [#allocation8], 0
      %s47 = sshll.u32 %s7, 4
      %s48 = int_to_ptr.hbm [resolvable:$true] %s47
      %s49 = sshll.u32 [#allocation7], 4
      %s50 = int_to_ptr.vmem [resolvable:$true] %s49
      %55 = dma.hbm_to_vmem [thread:$0]  %s48, 8192, %s50, [#allocation8], 128, 128, 8
    $region33: #{forward_pallas.1} parent=1 // pred_fallthru
      _
    // Predicated region
    $region34: #{forward_pallas.1} parent=1 // pred_check
      _
    $region35: #{forward_pallas.1} parent=1 // pred_check_branch
      %57 = sbr.rel (0) target = $region37
    $region36: #{forward_pallas.1} parent=1 // pred_region
      _
    $region37: #{forward_pallas.1} parent=1 // pred_fallthru
      _
    // Predicated region
    $region38: #{forward_pallas.1} parent=1 // pred_check
      _
    $region39: #{forward_pallas.1} parent=1 // pred_check_branch
      %59 = sbr.rel (0) target = $region41
    $region40: #{forward_pallas.1} parent=1 // pred_region
      _
    $region41: #{forward_pallas.1} parent=1 // pred_fallthru
      _
    // Predicated region
    $region42: #{forward_pallas.1} parent=1 // pred_check
      _
    $region43: #{forward_pallas.1} parent=1 // pred_check_branch
      %61 = sbr.rel (0) target = $region45
    $region44: #{forward_pallas.1} parent=1 // pred_region
      _
    $region45: #{forward_pallas.1} parent=1 // pred_fallthru
      _
    // Predicated region
    $region46: #{forward_pallas.1} parent=1 // pred_check
      _
    $region47: #{forward_pallas.1} parent=1 // pred_check_branch
      %63 = sbr.rel (0) target = $region49
    $region48: #{forward_pallas.1} parent=1 // pred_region
      %65 = dma.done [#allocation6], 12288
    $region49: #{forward_pallas.1} parent=1 // pred_fallthru
      _
    // Predicated region
    $region50: #{forward_pallas.1} parent=1 // pred_check
      _
    $region51: #{forward_pallas.1} parent=1 // pred_check_branch
      %67 = sbr.rel (0) target = $region53
    $region52: #{forward_pallas.1} parent=1 // pred_region
      %69 = dma.done [#allocation8], 8192
    $region53: #{forward_pallas.1} parent=1 // pred_fallthru
      _
    %v70 = vld [vmem:[%s0] sm:$0xff]
    %v71 = vld [vmem:[%s0 + $0x8] sm:$0xff]
    %v72 = vld [vmem:[%s0 + $0x10] sm:$0xff]
    %v73 = vld [vmem:[%s0 + $0x18] sm:$0xff]
    %v74 = vld [vmem:[%s0 + $0x20] sm:$0xff]
    %v75 = vld [vmem:[%s0 + $0x28] sm:$0xff]
    %v76 = vld [vmem:[%s0 + $0x30] sm:$0xff]
    %v77 = vld [vmem:[%s0 + $0x38] sm:$0xff]
    %v78 = vld [vmem:[%s0 + $0x40] sm:$0xff]
    %v79 = vld [vmem:[%s0 + $0x48] sm:$0xff]
    %v80 = vld [vmem:[%s0 + $0x50] sm:$0xff]
    %v81 = vld [vmem:[%s0 + $0x58] sm:$0xff]
    %v82 = vld [vmem:[%s0 + $0x60] sm:$0xff]
    %v83 = vld [vmem:[%s0 + $0x68] sm:$0xff]
    %v84 = vld [vmem:[%s0 + $0x70] sm:$0xff]
    %v85 = vld [vmem:[%s0 + $0x78] sm:$0xff]
    %v86 = vld [vmem:[%s0 + $0x80] sm:$0xff]
    %v87 = vld [vmem:[%s0 + $0x88] sm:$0xff]
    %v88 = vld [vmem:[%s0 + $0x90] sm:$0xff]
    %v89 = vld [vmem:[%s0 + $0x98] sm:$0xff]
    %v90 = vld [vmem:[%s0 + $0xa0] sm:$0xff]
    %v91 = vld [vmem:[%s0 + $0xa8] sm:$0xff]
    %v92 = vld [vmem:[%s0 + $0xb0] sm:$0xff]
    %v93 = vld [vmem:[%s0 + $0xb8] sm:$0xff]
    %v94 = vld [vmem:[%s0 + $0xc0] sm:$0xff]
    %v95 = vld [vmem:[%s0 + $0xc8] sm:$0xff]
    %v96 = vld [vmem:[%s0 + $0xd0] sm:$0xff]
    %v97 = vld [vmem:[%s0 + $0xd8] sm:$0xff]
    %v98 = vld [vmem:[%s0 + $0xe0] sm:$0xff]
    %v99 = vld [vmem:[%s0 + $0xe8] sm:$0xff]
    %v100 = vld [vmem:[%s1] sm:$0x1]
    %102 = vset.pattern.permute.xlu0 0
    %103 = vperm.xlu0 %102, %v70
    %v104 = vpop.permute.xlu0 %103
    %107 = vset.pattern.permute.xlu0 0
    %108 = vperm.xlu0 %107, %v71
    %v109 = vpop.permute.xlu0 %108
    %112 = vset.pattern.permute.xlu0 0
    %113 = vperm.xlu0 %112, %v72
    %v114 = vpop.permute.xlu0 %113
    %117 = vset.pattern.permute.xlu0 0
    %118 = vperm.xlu0 %117, %v73
    %v119 = vpop.permute.xlu0 %118
    %122 = vset.pattern.permute.xlu0 0
    %123 = vperm.xlu0 %122, %v74
    %v124 = vpop.permute.xlu0 %123
    %127 = vset.pattern.permute.xlu0 0
    %128 = vperm.xlu0 %127, %v75
    %v129 = vpop.permute.xlu0 %128
    %132 = vset.pattern.permute.xlu0 0
    %133 = vperm.xlu0 %132, %v76
    %v134 = vpop.permute.xlu0 %133
    %137 = vset.pattern.permute.xlu0 0
    %138 = vperm.xlu0 %137, %v77
    %v139 = vpop.permute.xlu0 %138
    %142 = vset.pattern.permute.xlu0 0
    %143 = vperm.xlu0 %142, %v78
    %v144 = vpop.permute.xlu0 %143
    %147 = vset.pattern.permute.xlu0 0
    %148 = vperm.xlu0 %147, %v79
    %v149 = vpop.permute.xlu0 %148
    %152 = vset.pattern.permute.xlu0 0
    %153 = vperm.xlu0 %152, %v80
    %v154 = vpop.permute.xlu0 %153
    %157 = vset.pattern.permute.xlu0 0
    %158 = vperm.xlu0 %157, %v81
    %v159 = vpop.permute.xlu0 %158
    %162 = vset.pattern.permute.xlu0 0
    %163 = vperm.xlu0 %162, %v82
    %v164 = vpop.permute.xlu0 %163
    %167 = vset.pattern.permute.xlu0 0
    %168 = vperm.xlu0 %167, %v83
    %v169 = vpop.permute.xlu0 %168
    %172 = vset.pattern.permute.xlu0 0
    %173 = vperm.xlu0 %172, %v84
    %v174 = vpop.permute.xlu0 %173
    %177 = vset.pattern.permute.xlu0 0
    %178 = vperm.xlu0 %177, %v85
    %v179 = vpop.permute.xlu0 %178
    %182 = vset.pattern.permute.xlu0 0
    %183 = vperm.xlu0 %182, %v86
    %v184 = vpop.permute.xlu0 %183
    %187 = vset.pattern.permute.xlu0 0
    %188 = vperm.xlu0 %187, %v87
    %v189 = vpop.permute.xlu0 %188
    %192 = vset.pattern.permute.xlu0 0
    %193 = vperm.xlu0 %192, %v88
    %v194 = vpop.permute.xlu0 %193
    %197 = vset.pattern.permute.xlu0 0
    %198 = vperm.xlu0 %197, %v89
    %v199 = vpop.permute.xlu0 %198
    %202 = vset.pattern.permute.xlu0 0
    %203 = vperm.xlu0 %202, %v90
    %v204 = vpop.permute.xlu0 %203
    %207 = vset.pattern.permute.xlu0 0
    %208 = vperm.xlu0 %207, %v91
    %v209 = vpop.permute.xlu0 %208
    %212 = vset.pattern.permute.xlu0 0
    %213 = vperm.xlu0 %212, %v92
    %v214 = vpop.permute.xlu0 %213
    %217 = vset.pattern.permute.xlu0 0
    %218 = vperm.xlu0 %217, %v93
    %v219 = vpop.permute.xlu0 %218
    %222 = vset.pattern.permute.xlu0 0
    %223 = vperm.xlu0 %222, %v94
    %v224 = vpop.permute.xlu0 %223
    %227 = vset.pattern.permute.xlu0 0
    %228 = vperm.xlu0 %227, %v95
    %v229 = vpop.permute.xlu0 %228
    %232 = vset.pattern.permute.xlu0 0
    %233 = vperm.xlu0 %232, %v96
    %v234 = vpop.permute.xlu0 %233
    %237 = vset.pattern.permute.xlu0 0
    %238 = vperm.xlu0 %237, %v97
    %v239 = vpop.permute.xlu0 %238
    %242 = vset.pattern.permute.xlu0 0
    %243 = vperm.xlu0 %242, %v98
    %v244 = vpop.permute.xlu0 %243
    %247 = vset.pattern.permute.xlu0 0
    %248 = vperm.xlu0 %247, %v99
    %v249 = vpop.permute.xlu0 %248
    %v251 = vperm.slane %v100, 0
    %v252 = vmul.f32 %v104, %v251
    %v253 = vmul.f32 %v109, %v251
    %v254 = vmul.f32 %v114, %v251
    %v255 = vmul.f32 %v119, %v251
    %v256 = vmul.f32 %v124, %v251
    %v257 = vmul.f32 %v129, %v251
    %v258 = vmul.f32 %v134, %v251
    %v259 = vmul.f32 %v139, %v251
    %v260 = vmul.f32 %v144, %v251
    %v261 = vmul.f32 %v149, %v251
    %v262 = vmul.f32 %v154, %v251
    %v263 = vmul.f32 %v159, %v251
    %v264 = vmul.f32 %v164, %v251
    %v265 = vmul.f32 %v169, %v251
    %v266 = vmul.f32 %v174, %v251
    %v267 = vmul.f32 %v179, %v251
    %v268 = vmul.f32 %v184, %v251
    %v269 = vmul.f32 %v189, %v251
    %v270 = vmul.f32 %v194, %v251
    %v271 = vmul.f32 %v199, %v251
    %v272 = vmul.f32 %v204, %v251
    %v273 = vmul.f32 %v209, %v251
    %v274 = vmul.f32 %v214, %v251
    %v275 = vmul.f32 %v219, %v251
    %v276 = vmul.f32 %v224, %v251
    %v277 = vmul.f32 %v229, %v251
    %v278 = vmul.f32 %v234, %v251
    %v279 = vmul.f32 %v239, %v251
    %v280 = vmul.f32 %v244, %v251
    %v281 = vmul.f32 %v249, %v251
    %v282 = vld [vmem:[%s0 + $0x8] sm:$0xff]
    %v283 = vld [vmem:[%s0 + $0x10] sm:$0xff]
    %v284 = vld [vmem:[%s0 + $0x18] sm:$0xff]
    %v285 = vld [vmem:[%s0 + $0x20] sm:$0xff]
    %v286 = vld [vmem:[%s0 + $0x28] sm:$0xff]
    %v287 = vld [vmem:[%s0 + $0x30] sm:$0xff]
    %v288 = vld [vmem:[%s0 + $0x38] sm:$0xff]
    %v289 = vld [vmem:[%s0 + $0x40] sm:$0xff]
    %v290 = vld [vmem:[%s0 + $0x48] sm:$0xff]
    %v291 = vld [vmem:[%s0 + $0x50] sm:$0xff]
    %v292 = vld [vmem:[%s0 + $0x58] sm:$0xff]
    %v293 = vld [vmem:[%s0 + $0x60] sm:$0xff]
    %v294 = vld [vmem:[%s0 + $0x68] sm:$0xff]
    %v295 = vld [vmem:[%s0 + $0x70] sm:$0xff]
    %v296 = vld [vmem:[%s0 + $0x78] sm:$0xff]
    %v297 = vld [vmem:[%s0 + $0x80] sm:$0xff]
    %v298 = vld [vmem:[%s0 + $0x88] sm:$0xff]
    %v299 = vld [vmem:[%s0 + $0x90] sm:$0xff]
    %v300 = vld [vmem:[%s0 + $0x98] sm:$0xff]
    %v301 = vld [vmem:[%s0 + $0xa0] sm:$0xff]
    %v302 = vld [vmem:[%s0 + $0xa8] sm:$0xff]
    %v303 = vld [vmem:[%s0 + $0xb0] sm:$0xff]
    %v304 = vld [vmem:[%s0 + $0xb8] sm:$0xff]
    %v305 = vld [vmem:[%s0 + $0xc0] sm:$0xff]
    %v306 = vld [vmem:[%s0 + $0xc8] sm:$0xff]
    %v307 = vld [vmem:[%s0 + $0xd0] sm:$0xff]
    %v308 = vld [vmem:[%s0 + $0xd8] sm:$0xff]
    %v309 = vld [vmem:[%s0 + $0xe0] sm:$0xff]
    %v310 = vld [vmem:[%s0 + $0xe8] sm:$0xff]
    %v311 = vld [vmem:[%s0 + $0xf0] sm:$0xff]
    %v312 = vld [vmem:[%s1 + $0x1] sm:$0x1]
    %314 = vset.pattern.permute.xlu0 0
    %315 = vperm.xlu0 %314, %v282
    %v316 = vpop.permute.xlu0 %315
    %319 = vset.pattern.permute.xlu0 0
    %320 = vperm.xlu0 %319, %v283
    %v321 = vpop.permute.xlu0 %320
    %324 = vset.pattern.permute.xlu0 0
    %325 = vperm.xlu0 %324, %v284
    %v326 = vpop.permute.xlu0 %325
    %329 = vset.pattern.permute.xlu0 0
    %330 = vperm.xlu0 %329, %v285
    %v331 = vpop.permute.xlu0 %330
    %334 = vset.pattern.permute.xlu0 0
    %335 = vperm.xlu0 %334, %v286
    %v336 = vpop.permute.xlu0 %335
    %339 = vset.pattern.permute.xlu0 0
    %340 = vperm.xlu0 %339, %v287
    %v341 = vpop.permute.xlu0 %340
    %344 = vset.pattern.permute.xlu0 0
    %345 = vperm.xlu0 %344, %v288
    %v346 = vpop.permute.xlu0 %345
    %349 = vset.pattern.permute.xlu0 0
    %350 = vperm.xlu0 %349, %v289
    %v351 = vpop.permute.xlu0 %350
    %354 = vset.pattern.permute.xlu0 0
    %355 = vperm.xlu0 %354, %v290
    %v356 = vpop.permute.xlu0 %355
    %359 = vset.pattern.permute.xlu0 0
    %360 = vperm.xlu0 %359, %v291
    %v361 = vpop.permute.xlu0 %360
    %364 = vset.pattern.permute.xlu0 0
    %365 = vperm.xlu0 %364, %v292
    %v366 = vpop.permute.xlu0 %365
    %369 = vset.pattern.permute.xlu0 0
    %370 = vperm.xlu0 %369, %v293
    %v371 = vpop.permute.xlu0 %370
    %374 = vset.pattern.permute.xlu0 0
    %375 = vperm.xlu0 %374, %v294
    %v376 = vpop.permute.xlu0 %375
    %379 = vset.pattern.permute.xlu0 0
    %380 = vperm.xlu0 %379, %v295
    %v381 = vpop.permute.xlu0 %380
    %384 = vset.pattern.permute.xlu0 0
    %385 = vperm.xlu0 %384, %v296
    %v386 = vpop.permute.xlu0 %385
    %389 = vset.pattern.permute.xlu0 0
    %390 = vperm.xlu0 %389, %v297
    %v391 = vpop.permute.xlu0 %390
    %394 = vset.pattern.permute.xlu0 0
    %395 = vperm.xlu0 %394, %v298
    %v396 = vpop.permute.xlu0 %395
    %399 = vset.pattern.permute.xlu0 0
    %400 = vperm.xlu0 %399, %v299
    %v401 = vpop.permute.xlu0 %400
    %404 = vset.pattern.permute.xlu0 0
    %405 = vperm.xlu0 %404, %v300
    %v406 = vpop.permute.xlu0 %405
    %409 = vset.pattern.permute.xlu0 0
    %410 = vperm.xlu0 %409, %v301
    %v411 = vpop.permute.xlu0 %410
    %414 = vset.pattern.permute.xlu0 0
    %415 = vperm.xlu0 %414, %v302
    %v416 = vpop.permute.xlu0 %415
    %419 = vset.pattern.permute.xlu0 0
    %420 = vperm.xlu0 %419, %v303
    %v421 = vpop.permute.xlu0 %420
    %424 = vset.pattern.permute.xlu0 0
    %425 = vperm.xlu0 %424, %v304
    %v426 = vpop.permute.xlu0 %425
    %429 = vset.pattern.permute.xlu0 0
    %430 = vperm.xlu0 %429, %v305
    %v431 = vpop.permute.xlu0 %430
    %434 = vset.pattern.permute.xlu0 0
    %435 = vperm.xlu0 %434, %v306
    %v436 = vpop.permute.xlu0 %435
    %439 = vset.pattern.permute.xlu0 0
    %440 = vperm.xlu0 %439, %v307
    %v441 = vpop.permute.xlu0 %440
    %444 = vset.pattern.permute.xlu0 0
    %445 = vperm.xlu0 %444, %v308
    %v446 = vpop.permute.xlu0 %445
    %449 = vset.pattern.permute.xlu0 0
    %450 = vperm.xlu0 %449, %v309
    %v451 = vpop.permute.xlu0 %450
    %454 = vset.pattern.permute.xlu0 0
    %455 = vperm.xlu0 %454, %v310
    %v456 = vpop.permute.xlu0 %455
    %459 = vset.pattern.permute.xlu0 0
    %460 = vperm.xlu0 %459, %v311
    %v461 = vpop.permute.xlu0 %460
    %v463 = vperm.slane %v312, 0
    %v464 = vmul.f32 %v316, %v463
    %v465 = vmul.f32 %v321, %v463
    %v466 = vmul.f32 %v326, %v463
    %v467 = vmul.f32 %v331, %v463
    %v468 = vmul.f32 %v336, %v463
    %v469 = vmul.f32 %v341, %v463
    %v470 = vmul.f32 %v346, %v463
    %v471 = vmul.f32 %v351, %v463
    %v472 = vmul.f32 %v356, %v463
    %v473 = vmul.f32 %v361, %v463
    %v474 = vmul.f32 %v366, %v463
    %v475 = vmul.f32 %v371, %v463
    %v476 = vmul.f32 %v376, %v463
    %v477 = vmul.f32 %v381, %v463
    %v478 = vmul.f32 %v386, %v463
    %v479 = vmul.f32 %v391, %v463
    %v480 = vmul.f32 %v396, %v463
    %v481 = vmul.f32 %v401, %v463
    %v482 = vmul.f32 %v406, %v463
    %v483 = vmul.f32 %v411, %v463
    %v484 = vmul.f32 %v416, %v463
    %v485 = vmul.f32 %v421, %v463
    %v486 = vmul.f32 %v426, %v463
    %v487 = vmul.f32 %v431, %v463
    %v488 = vmul.f32 %v436, %v463
    %v489 = vmul.f32 %v441, %v463
    %v490 = vmul.f32 %v446, %v463
    %v491 = vmul.f32 %v451, %v463
    %v492 = vmul.f32 %v456, %v463
    %v493 = vmul.f32 %v461, %v463
    %v494 = vadd.f32 %v252, %v464
    %v495 = vadd.f32 %v253, %v465
    %v496 = vadd.f32 %v254, %v466
    %v497 = vadd.f32 %v255, %v467
    %v498 = vadd.f32 %v256, %v468
    %v499 = vadd.f32 %v257, %v469
    %v500 = vadd.f32 %v258, %v470
    %v501 = vadd.f32 %v259, %v471
    %v502 = vadd.f32 %v260, %v472
    %v503 = vadd.f32 %v261, %v473
    %v504 = vadd.f32 %v262, %v474
    %v505 = vadd.f32 %v263, %v475
    %v506 = vadd.f32 %v264, %v476
    %v507 = vadd.f32 %v265, %v477
    %v508 = vadd.f32 %v266, %v478
    %v509 = vadd.f32 %v267, %v479
    %v510 = vadd.f32 %v268, %v480
    %v511 = vadd.f32 %v269, %v481
    %v512 = vadd.f32 %v270, %v482
    %v513 = vadd.f32 %v271, %v483
    %v514 = vadd.f32 %v272, %v484
    %v515 = vadd.f32 %v273, %v485
    %v516 = vadd.f32 %v274, %v486
    %v517 = vadd.f32 %v275, %v487
    %v518 = vadd.f32 %v276, %v488
    %v519 = vadd.f32 %v277, %v489
    %v520 = vadd.f32 %v278, %v490
    %v521 = vadd.f32 %v279, %v491
    %v522 = vadd.f32 %v280, %v492
    %v523 = vadd.f32 %v281, %v493
    %v524 = vld [vmem:[%s0 + $0x10] sm:$0xff]
    %v525 = vld [vmem:[%s0 + $0x18] sm:$0xff]
    %v526 = vld [vmem:[%s0 + $0x20] sm:$0xff]
    %v527 = vld [vmem:[%s0 + $0x28] sm:$0xff]
    %v528 = vld [vmem:[%s0 + $0x30] sm:$0xff]
    %v529 = vld [vmem:[%s0 + $0x38] sm:$0xff]
    %v530 = vld [vmem:[%s0 + $0x40] sm:$0xff]
    %v531 = vld [vmem:[%s0 + $0x48] sm:$0xff]
    %v532 = vld [vmem:[%s0 + $0x50] sm:$0xff]
    %v533 = vld [vmem:[%s0 + $0x58] sm:$0xff]
    %v534 = vld [vmem:[%s0 + $0x60] sm:$0xff]
    %v535 = vld [vmem:[%s0 + $0x68] sm:$0xff]
    %v536 = vld [vmem:[%s0 + $0x70] sm:$0xff]
    %v537 = vld [vmem:[%s0 + $0x78] sm:$0xff]
    %v538 = vld [vmem:[%s0 + $0x80] sm:$0xff]
    %v539 = vld [vmem:[%s0 + $0x88] sm:$0xff]
    %v540 = vld [vmem:[%s0 + $0x90] sm:$0xff]
    %v541 = vld [vmem:[%s0 + $0x98] sm:$0xff]
    %v542 = vld [vmem:[%s0 + $0xa0] sm:$0xff]
    %v543 = vld [vmem:[%s0 + $0xa8] sm:$0xff]
    %v544 = vld [vmem:[%s0 + $0xb0] sm:$0xff]
    %v545 = vld [vmem:[%s0 + $0xb8] sm:$0xff]
    %v546 = vld [vmem:[%s0 + $0xc0] sm:$0xff]
    %v547 = vld [vmem:[%s0 + $0xc8] sm:$0xff]
    %v548 = vld [vmem:[%s0 + $0xd0] sm:$0xff]
    %v549 = vld [vmem:[%s0 + $0xd8] sm:$0xff]
    %v550 = vld [vmem:[%s0 + $0xe0] sm:$0xff]
    %v551 = vld [vmem:[%s0 + $0xe8] sm:$0xff]
    %v552 = vld [vmem:[%s0 + $0xf0] sm:$0xff]
    %v553 = vld [vmem:[%s0 + $0xf8] sm:$0xff]
    %v554 = vld [vmem:[%s1 + $0x2] sm:$0x1]
    %556 = vset.pattern.permute.xlu0 0
    %557 = vperm.xlu0 %556, %v524
    %v558 = vpop.permute.xlu0 %557
    %561 = vset.pattern.permute.xlu0 0
    %562 = vperm.xlu0 %561, %v525
    %v563 = vpop.permute.xlu0 %562
    %566 = vset.pattern.permute.xlu0 0
    %567 = vperm.xlu0 %566, %v526
    %v568 = vpop.permute.xlu0 %567
    %571 = vset.pattern.permute.xlu0 0
    %572 = vperm.xlu0 %571, %v527
    %v573 = vpop.permute.xlu0 %572
    %576 = vset.pattern.permute.xlu0 0
    %577 = vperm.xlu0 %576, %v528
    %v578 = vpop.permute.xlu0 %577
    %581 = vset.pattern.permute.xlu0 0
    %582 = vperm.xlu0 %581, %v529
    %v583 = vpop.permute.xlu0 %582
    %586 = vset.pattern.permute.xlu0 0
    %587 = vperm.xlu0 %586, %v530
    %v588 = vpop.permute.xlu0 %587
    %591 = vset.pattern.permute.xlu0 0
    %592 = vperm.xlu0 %591, %v531
    %v593 = vpop.permute.xlu0 %592
    %596 = vset.pattern.permute.xlu0 0
    %597 = vperm.xlu0 %596, %v532
    %v598 = vpop.permute.xlu0 %597
    %601 = vset.pattern.permute.xlu0 0
    %602 = vperm.xlu0 %601, %v533
    %v603 = vpop.permute.xlu0 %602
    %606 = vset.pattern.permute.xlu0 0
    %607 = vperm.xlu0 %606, %v534
    %v608 = vpop.permute.xlu0 %607
    %611 = vset.pattern.permute.xlu0 0
    %612 = vperm.xlu0 %611, %v535
    %v613 = vpop.permute.xlu0 %612
    %616 = vset.pattern.permute.xlu0 0
    %617 = vperm.xlu0 %616, %v536
    %v618 = vpop.permute.xlu0 %617
    %621 = vset.pattern.permute.xlu0 0
    %622 = vperm.xlu0 %621, %v537
    %v623 = vpop.permute.xlu0 %622
    %626 = vset.pattern.permute.xlu0 0
    %627 = vperm.xlu0 %626, %v538
    %v628 = vpop.permute.xlu0 %627
    %631 = vset.pattern.permute.xlu0 0
    %632 = vperm.xlu0 %631, %v539
    %v633 = vpop.permute.xlu0 %632
    %636 = vset.pattern.permute.xlu0 0
    %637 = vperm.xlu0 %636, %v540
    %v638 = vpop.permute.xlu0 %637
    %641 = vset.pattern.permute.xlu0 0
    %642 = vperm.xlu0 %641, %v541
    %v643 = vpop.permute.xlu0 %642
    %646 = vset.pattern.permute.xlu0 0
    %647 = vperm.xlu0 %646, %v542
    %v648 = vpop.permute.xlu0 %647
    %651 = vset.pattern.permute.xlu0 0
    %652 = vperm.xlu0 %651, %v543
    %v653 = vpop.permute.xlu0 %652
    %656 = vset.pattern.permute.xlu0 0
    %657 = vperm.xlu0 %656, %v544
    %v658 = vpop.permute.xlu0 %657
    %661 = vset.pattern.permute.xlu0 0
    %662 = vperm.xlu0 %661, %v545
    %v663 = vpop.permute.xlu0 %662
    %666 = vset.pattern.permute.xlu0 0
    %667 = vperm.xlu0 %666, %v546
    %v668 = vpop.permute.xlu0 %667
    %671 = vset.pattern.permute.xlu0 0
    %672 = vperm.xlu0 %671, %v547
    %v673 = vpop.permute.xlu0 %672
    %676 = vset.pattern.permute.xlu0 0
    %677 = vperm.xlu0 %676, %v548
    %v678 = vpop.permute.xlu0 %677
    %681 = vset.pattern.permute.xlu0 0
    %682 = vperm.xlu0 %681, %v549
    %v683 = vpop.permute.xlu0 %682
    %686 = vset.pattern.permute.xlu0 0
    %687 = vperm.xlu0 %686, %v550
    %v688 = vpop.permute.xlu0 %687
    %691 = vset.pattern.permute.xlu0 0
    %692 = vperm.xlu0 %691, %v551
    %v693 = vpop.permute.xlu0 %692
    %696 = vset.pattern.permute.xlu0 0
    %697 = vperm.xlu0 %696, %v552
    %v698 = vpop.permute.xlu0 %697
    %701 = vset.pattern.permute.xlu0 0
    %702 = vperm.xlu0 %701, %v553
    %v703 = vpop.permute.xlu0 %702
    %v705 = vperm.slane %v554, 0
    %v706 = vmul.f32 %v558, %v705
    %v707 = vmul.f32 %v563, %v705
    %v708 = vmul.f32 %v568, %v705
    %v709 = vmul.f32 %v573, %v705
    %v710 = vmul.f32 %v578, %v705
    %v711 = vmul.f32 %v583, %v705
    %v712 = vmul.f32 %v588, %v705
    %v713 = vmul.f32 %v593, %v705
    %v714 = vmul.f32 %v598, %v705
    %v715 = vmul.f32 %v603, %v705
    %v716 = vmul.f32 %v608, %v705
    %v717 = vmul.f32 %v613, %v705
    %v718 = vmul.f32 %v618, %v705
    %v719 = vmul.f32 %v623, %v705
    %v720 = vmul.f32 %v628, %v705
    %v721 = vmul.f32 %v633, %v705
    %v722 = vmul.f32 %v638, %v705
    %v723 = vmul.f32 %v643, %v705
    %v724 = vmul.f32 %v648, %v705
    %v725 = vmul.f32 %v653, %v705
    %v726 = vmul.f32 %v658, %v705
    %v727 = vmul.f32 %v663, %v705
    %v728 = vmul.f32 %v668, %v705
    %v729 = vmul.f32 %v673, %v705
    %v730 = vmul.f32 %v678, %v705
    %v731 = vmul.f32 %v683, %v705
    %v732 = vmul.f32 %v688, %v705
    %v733 = vmul.f32 %v693, %v705
    %v734 = vmul.f32 %v698, %v705
    %v735 = vmul.f32 %v703, %v705
    %v736 = vadd.f32 %v494, %v706
    %v737 = vadd.f32 %v495, %v707
    %v738 = vadd.f32 %v496, %v708
    %v739 = vadd.f32 %v497, %v709
    %v740 = vadd.f32 %v498, %v710
    %v741 = vadd.f32 %v499, %v711
    %v742 = vadd.f32 %v500, %v712
    %v743 = vadd.f32 %v501, %v713
    %v744 = vadd.f32 %v502, %v714
    %v745 = vadd.f32 %v503, %v715
    %v746 = vadd.f32 %v504, %v716
    %v747 = vadd.f32 %v505, %v717
    %v748 = vadd.f32 %v506, %v718
    %v749 = vadd.f32 %v507, %v719
    %v750 = vadd.f32 %v508, %v720
    %v751 = vadd.f32 %v509, %v721
    %v752 = vadd.f32 %v510, %v722
    %v753 = vadd.f32 %v511, %v723
    %v754 = vadd.f32 %v512, %v724
    %v755 = vadd.f32 %v513, %v725
    %v756 = vadd.f32 %v514, %v726
    %v757 = vadd.f32 %v515, %v727
    %v758 = vadd.f32 %v516, %v728
    %v759 = vadd.f32 %v517, %v729
    %v760 = vadd.f32 %v518, %v730
    %v761 = vadd.f32 %v519, %v731
    %v762 = vadd.f32 %v520, %v732
    %v763 = vadd.f32 %v521, %v733
    %v764 = vadd.f32 %v522, %v734
    %v765 = vadd.f32 %v523, %v735
    %v766 = vld [vmem:[%s2] sm:$0x1]
    %v768 = vperm.slane %v766, 0
    %v770 = vadd.f32 %v736, %v768
    %v771 = vadd.f32 %v737, %v768
    %v772 = vadd.f32 %v738, %v768
    %v773 = vadd.f32 %v739, %v768
    %v774 = vadd.f32 %v740, %v768
    %v775 = vadd.f32 %v741, %v768
    %v776 = vadd.f32 %v742, %v768
    %v777 = vadd.f32 %v743, %v768
    %v778 = vadd.f32 %v744, %v768
    %v779 = vadd.f32 %v745, %v768
    %v780 = vadd.f32 %v746, %v768
    %v781 = vadd.f32 %v747, %v768
    %v782 = vadd.f32 %v748, %v768
    %v783 = vadd.f32 %v749, %v768
    %v784 = vadd.f32 %v750, %v768
    %v785 = vadd.f32 %v751, %v768
    %v786 = vadd.f32 %v752, %v768
    %v787 = vadd.f32 %v753, %v768
    %v788 = vadd.f32 %v754, %v768
    %v789 = vadd.f32 %v755, %v768
    %v790 = vadd.f32 %v756, %v768
    %v791 = vadd.f32 %v757, %v768
    %v792 = vadd.f32 %v758, %v768
    %v793 = vadd.f32 %v759, %v768
    %v794 = vadd.f32 %v760, %v768
    %v795 = vadd.f32 %v761, %v768
    %v796 = vadd.f32 %v762, %v768
    %v797 = vadd.f32 %v763, %v768
    %v798 = vadd.f32 %v764, %v768
    %v799 = vadd.f32 %v765, %v768
    %v800 = vmax.f32 %v770, 0.0
    %v801 = vmax.f32 %v771, 0.0
    %v802 = vmax.f32 %v772, 0.0
    %v803 = vmax.f32 %v773, 0.0
    %v804 = vmax.f32 %v774, 0.0
    %v805 = vmax.f32 %v775, 0.0
    %v806 = vmax.f32 %v776, 0.0
    %v807 = vmax.f32 %v777, 0.0
    %v808 = vmax.f32 %v778, 0.0
    %v809 = vmax.f32 %v779, 0.0
    %v810 = vmax.f32 %v780, 0.0
    %v811 = vmax.f32 %v781, 0.0
    %v812 = vmax.f32 %v782, 0.0
    %v813 = vmax.f32 %v783, 0.0
    %v814 = vmax.f32 %v784, 0.0
    %v815 = vmax.f32 %v785, 0.0
    %v816 = vmax.f32 %v786, 0.0
    %v817 = vmax.f32 %v787, 0.0
    %v818 = vmax.f32 %v788, 0.0
    %v819 = vmax.f32 %v789, 0.0
    %v820 = vmax.f32 %v790, 0.0
    %v821 = vmax.f32 %v791, 0.0
    %v822 = vmax.f32 %v792, 0.0
    %v823 = vmax.f32 %v793, 0.0
    %v824 = vmax.f32 %v794, 0.0
    %v825 = vmax.f32 %v795, 0.0
    %v826 = vmax.f32 %v796, 0.0
    %v827 = vmax.f32 %v797, 0.0
    %v828 = vmax.f32 %v798, 0.0
    %v829 = vmax.f32 %v799, 0.0
    %v830 = vmax.f32 %v800, %v801
    %vm831 = vcmask 523264
    %832 = vst.msk [vmem:[#allocation2] sm:$0xff] %vm831, %v830
    %v833 = vmax.f32 %v802, %v803
    %834 = vst.msk [vmem:[#allocation2 + $0x8] sm:$0xff] %vm831, %v833
    %v835 = vmax.f32 %v804, %v805
    %836 = vst.msk [vmem:[#allocation2 + $0x10] sm:$0xff] %vm831, %v835
    %v837 = vmax.f32 %v806, %v807
    %838 = vst.msk [vmem:[#allocation2 + $0x18] sm:$0xff] %vm831, %v837
    %v839 = vmax.f32 %v808, %v809
    %840 = vst.msk [vmem:[#allocation2 + $0x20] sm:$0xff] %vm831, %v839
    %v841 = vmax.f32 %v810, %v811
    %842 = vst.msk [vmem:[#allocation2 + $0x28] sm:$0xff] %vm831, %v841
    %v843 = vmax.f32 %v812, %v813
    %844 = vst.msk [vmem:[#allocation2 + $0x30] sm:$0xff] %vm831, %v843
    %v845 = vmax.f32 %v814, %v815
    %846 = vst.msk [vmem:[#allocation2 + $0x38] sm:$0xff] %vm831, %v845
    %v847 = vmax.f32 %v816, %v817
    %848 = vst.msk [vmem:[#allocation2 + $0x40] sm:$0xff] %vm831, %v847
    %v849 = vmax.f32 %v818, %v819
    %850 = vst.msk [vmem:[#allocation2 + $0x48] sm:$0xff] %vm831, %v849
    %v851 = vmax.f32 %v820, %v821
    %852 = vst.msk [vmem:[#allocation2 + $0x50] sm:$0xff] %vm831, %v851
    %v853 = vmax.f32 %v822, %v823
    %854 = vst.msk [vmem:[#allocation2 + $0x58] sm:$0xff] %vm831, %v853
    %v855 = vmax.f32 %v824, %v825
    %856 = vst.msk [vmem:[#allocation2 + $0x60] sm:$0xff] %vm831, %v855
    %v857 = vmax.f32 %v826, %v827
    %858 = vst.msk [vmem:[#allocation2 + $0x68] sm:$0xff] %vm831, %v857
    %v859 = vmax.f32 %v828, %v829
    %860 = vst.msk [vmem:[#allocation2 + $0x70] sm:$0xff] %vm831, %v859
    %v861 = vld [vmem:[#allocation2] sm:$0xff]
    %v862 = vld [vmem:[#allocation2 + $0x8] sm:$0xff]
    %v863 = vld [vmem:[#allocation2 + $0x10] sm:$0xff]
    %v864 = vld [vmem:[#allocation2 + $0x18] sm:$0xff]
    %v865 = vld [vmem:[#allocation2 + $0x20] sm:$0xff]
    %v866 = vld [vmem:[#allocation2 + $0x28] sm:$0xff]
    %v867 = vld [vmem:[#allocation2 + $0x30] sm:$0xff]
    %v868 = vld [vmem:[#allocation2 + $0x38] sm:$0xff]
    %v869 = vld [vmem:[#allocation2 + $0x40] sm:$0xff]
    %v870 = vld [vmem:[#allocation2 + $0x48] sm:$0xff]
    %v871 = vld [vmem:[#allocation2 + $0x50] sm:$0xff]
    %v872 = vld [vmem:[#allocation2 + $0x58] sm:$0xff]
    %v873 = vld [vmem:[#allocation2 + $0x60] sm:$0xff]
    %v874 = vld [vmem:[#allocation2 + $0x68] sm:$0xff]
    %v875 = vld [vmem:[#allocation2 + $0x70] sm:$0xff]
    %889 = vrot.lane.b32.xlu0 %v862, 64
    %v890 = vpop.permute.xlu0 %889
    %891 = vrot.lane.b32.xlu0 %v863, 64
    %v892 = vpop.permute.xlu0 %891
    %893 = vrot.lane.b32.xlu0 %v864, 64
    %v894 = vpop.permute.xlu0 %893
    %895 = vrot.lane.b32.xlu0 %v865, 64
    %v896 = vpop.permute.xlu0 %895
    %897 = vrot.lane.b32.xlu0 %v866, 64
    %v898 = vpop.permute.xlu0 %897
    %899 = vrot.lane.b32.xlu0 %v867, 64
    %v900 = vpop.permute.xlu0 %899
    %901 = vrot.lane.b32.xlu0 %v868, 64
    %v902 = vpop.permute.xlu0 %901
    %903 = vrot.lane.b32.xlu0 %v869, 64
    %v904 = vpop.permute.xlu0 %903
    %905 = vrot.lane.b32.xlu0 %v870, 64
    %v906 = vpop.permute.xlu0 %905
    %907 = vrot.lane.b32.xlu0 %v871, 64
    %v908 = vpop.permute.xlu0 %907
    %909 = vrot.lane.b32.xlu0 %v872, 64
    %v910 = vpop.permute.xlu0 %909
    %911 = vrot.lane.b32.xlu0 %v873, 64
    %v912 = vpop.permute.xlu0 %911
    %913 = vrot.lane.b32.xlu0 %v874, 64
    %v914 = vpop.permute.xlu0 %913
    %v928 = vsel %vm831, %v861, %v890
    %v929 = vsel %vm831, %v862, %v892
    %v930 = vsel %vm831, %v863, %v894
    %v931 = vsel %vm831, %v864, %v896
    %v932 = vsel %vm831, %v865, %v898
    %v933 = vsel %vm831, %v866, %v900
    %v934 = vsel %vm831, %v867, %v902
    %v935 = vsel %vm831, %v868, %v904
    %v936 = vsel %vm831, %v869, %v906
    %v937 = vsel %vm831, %v870, %v908
    %v938 = vsel %vm831, %v871, %v910
    %v939 = vsel %vm831, %v872, %v912
    %v940 = vsel %vm831, %v873, %v914
    %v941 = vld [vmem:[%s3] sm:$0xff]
    %v942 = vld [vmem:[%s3 + $0x8] sm:$0xff]
    %v943 = vld [vmem:[%s3 + $0x10] sm:$0xff]
    %v944 = vld [vmem:[%s3 + $0x18] sm:$0xff]
    %v945 = vld [vmem:[%s3 + $0x20] sm:$0xff]
    %v946 = vld [vmem:[%s3 + $0x28] sm:$0xff]
    %v947 = vld [vmem:[%s3 + $0x30] sm:$0xff]
    %v948 = vld [vmem:[%s3 + $0x38] sm:$0xff]
    %v949 = vld [vmem:[%s3 + $0x40] sm:$0xff]
    %v950 = vld [vmem:[%s3 + $0x48] sm:$0xff]
    %v951 = vld [vmem:[%s3 + $0x50] sm:$0xff]
    %v952 = vld [vmem:[%s3 + $0x58] sm:$0xff]
    %v953 = vld [vmem:[%s3 + $0x60] sm:$0xff]
    %v954 = vld [vmem:[%s3 + $0x68] sm:$0xff]
    %v955 = vld [vmem:[%s3 + $0x70] sm:$0xff]
    %v956 = vld [vmem:[%s3 + $0x78] sm:$0xff]
    %v957 = vld [vmem:[%s3 + $0x80] sm:$0xff]
    %v958 = vld [vmem:[%s3 + $0x88] sm:$0xff]
    %v959 = vld [vmem:[%s3 + $0x90] sm:$0xff]
    %v960 = vld [vmem:[%s3 + $0x98] sm:$0xff]
    %v961 = vld [vmem:[%s3 + $0xa0] sm:$0xff]
    %v962 = vld [vmem:[%s3 + $0xa8] sm:$0xff]
    %v963 = vld [vmem:[%s3 + $0xb0] sm:$0xff]
    %v964 = vld [vmem:[%s3 + $0xb8] sm:$0xff]
    %v965 = vld [vmem:[%s4] sm:$0x1]
    %v967 = vperm.slane %v965, 0
    %v969 = vsel %vm831, %v863, 0
    %v971 = vsel %vm831, %v864, 0
    %v973 = vsel %vm831, %v865, 0
    %v975 = vsel %vm831, %v866, 0
    %v977 = vsel %vm831, %v867, 0
    %v979 = vsel %vm831, %v868, 0
    %v981 = vsel %vm831, %v869, 0
    %v983 = vsel %vm831, %v870, 0
    %v985 = vsel %vm831, %v871, 0
    %v987 = vsel %vm831, %v872, 0
    %v989 = vsel %vm831, %v873, 0
    %v991 = vsel %vm831, %v874, 0
    %v994 = vsel %vm831, %v875, 0
    %996 = vmatpush.msra.mxu0 %v956
    %997 = vmatpush.msra.mxu0 %v955
    %998 = vmatpush.msra.mxu0 %v954
    %999 = vmatpush.msra.mxu0 %v953
    %1000 = vmatpush.msra.mxu0 %v952
    %1001 = vmatpush.msra.mxu0 %v951
    %1002 = vmatpush.msra.mxu0 %v950
    %1003 = vmatpush.msra.mxu0 %v949
    %1004 = vmatpush.msra.mxu0 %v948
    %1005 = vmatpush.msra.mxu0 %v947
    %1006 = vmatpush.msra.mxu0 %v946
    %1007 = vmatpush.msra.mxu0 %v945
    %1008 = vmatpush.msra.mxu0 %v944
    %1009 = vmatpush.msra.mxu0 %v943
    %1010 = vmatpush.msra.mxu0 %v942
    %1011 = vmatpush.msra.mxu0 %v941
    %1012 = vmatmul.f32.gmra.mxu0 %v928
    %v1013 = vpop.f32.mrf.mxu0
    %v1014 = vadd.f32 %v967, %v1013
    %1015 = vmatmul.f32.gmra.mxu0 %v929
    %v1016 = vpop.f32.mrf.mxu0
    %v1017 = vadd.f32 %v967, %v1016
    %1018 = vmatmul.f32.gmra.mxu0 %v930
    %v1019 = vpop.f32.mrf.mxu0
    %v1020 = vadd.f32 %v967, %v1019
    %1021 = vmatmul.f32.gmra.mxu0 %v931
    %v1022 = vpop.f32.mrf.mxu0
    %v1023 = vadd.f32 %v967, %v1022
    %1024 = vmatmul.f32.gmra.mxu0 %v932
    %v1025 = vpop.f32.mrf.mxu0
    %v1026 = vadd.f32 %v967, %v1025
    %1027 = vmatmul.f32.gmra.mxu0 %v933
    %v1028 = vpop.f32.mrf.mxu0
    %v1029 = vadd.f32 %v967, %v1028
    %1030 = vmatmul.f32.gmra.mxu0 %v934
    %v1031 = vpop.f32.mrf.mxu0
    %v1032 = vadd.f32 %v967, %v1031
    %1033 = vmatmul.f32.gmra.mxu0 %v935
    %v1034 = vpop.f32.mrf.mxu0
    %v1035 = vadd.f32 %v967, %v1034
    %1036 = vmatmul.f32.gmra.mxu0 %v936
    %v1037 = vpop.f32.mrf.mxu0
    %v1038 = vadd.f32 %v967, %v1037
    %1039 = vmatmul.f32.gmra.mxu0 %v937
    %v1040 = vpop.f32.mrf.mxu0
    %v1041 = vadd.f32 %v967, %v1040
    %1042 = vmatmul.f32.gmra.mxu0 %v938
    %v1043 = vpop.f32.mrf.mxu0
    %v1044 = vadd.f32 %v967, %v1043
    %1045 = vmatmul.f32.gmra.mxu0 %v939
    %v1046 = vpop.f32.mrf.mxu0
    %v1047 = vadd.f32 %v967, %v1046
    %1048 = vmatmul.f32.gmra.mxu0 %v940
    %v1049 = vpop.f32.mrf.mxu0
    %1050 = vdwg.mxu0
    %1051 = vmatpush.msra.mxu0 0.0
    %1052 = vmatpush.msra.mxu0 0.0
    %1053 = vmatpush.msra.mxu0 0.0
    %1054 = vmatpush.msra.mxu0 0.0
    %1055 = vmatpush.msra.mxu0 0.0
    %1056 = vmatpush.msra.mxu0 0.0
    %1057 = vmatpush.msra.mxu0 0.0
    %1058 = vmatpush.msra.mxu0 0.0
    %1059 = vmatpush.msra.mxu0 %v964
    %1060 = vmatpush.msra.mxu0 %v963
    %1061 = vmatpush.msra.mxu0 %v962
    %1062 = vmatpush.msra.mxu0 %v961
    %1063 = vmatpush.msra.mxu0 %v960
    %1064 = vmatpush.msra.mxu0 %v959
    %1065 = vmatpush.msra.mxu0 %v958
    %1066 = vmatpush.msra.mxu0 %v957
    %1067 = vmatmul.f32.gmra.mxu0 %v969
    %v1068 = vpop.f32.mrf.mxu0
    %v1069 = vadd.f32 %v1014, %v1068
    %1070 = vmatmul.f32.gmra.mxu0 %v971
    %v1071 = vpop.f32.mrf.mxu0
    %v1072 = vadd.f32 %v1017, %v1071
    %1073 = vmatmul.f32.gmra.mxu0 %v973
    %v1074 = vpop.f32.mrf.mxu0
    %v1075 = vadd.f32 %v1020, %v1074
    %1076 = vmatmul.f32.gmra.mxu0 %v975
    %v1077 = vpop.f32.mrf.mxu0
    %v1078 = vadd.f32 %v1023, %v1077
    %1079 = vmatmul.f32.gmra.mxu0 %v977
    %v1080 = vpop.f32.mrf.mxu0
    %v1081 = vadd.f32 %v1026, %v1080
    %1082 = vmatmul.f32.gmra.mxu0 %v979
    %v1083 = vpop.f32.mrf.mxu0
    %v1084 = vadd.f32 %v1029, %v1083
    %1085 = vmatmul.f32.gmra.mxu0 %v981
    %v1086 = vpop.f32.mrf.mxu0
    %v1087 = vadd.f32 %v1032, %v1086
    %1088 = vmatmul.f32.gmra.mxu0 %v983
    %v1089 = vpop.f32.mrf.mxu0
    %v1090 = vadd.f32 %v1035, %v1089
    %1091 = vmatmul.f32.gmra.mxu0 %v985
    %v1092 = vpop.f32.mrf.mxu0
    %v1093 = vadd.f32 %v1038, %v1092
    %1094 = vmatmul.f32.gmra.mxu0 %v987
    %v1095 = vpop.f32.mrf.mxu0
    %v1096 = vadd.f32 %v1041, %v1095
    %1097 = vmatmul.f32.gmra.mxu0 %v989
    %v1098 = vpop.f32.mrf.mxu0
    %v1099 = vadd.f32 %v1044, %v1098
    %1100 = vmatmul.f32.gmra.mxu0 %v991
    %v1101 = vpop.f32.mrf.mxu0
    %v1102 = vadd.f32 %v1047, %v1101
    %1103 = vmatmul.f32.gmra.mxu0 %v994
    %v1104 = vpop.f32.mrf.mxu0
    %1105 = vdwg.mxu0
    %v1106 = vmax.f32 %v1069, 0.0
    %v1107 = vmax.f32 %v1072, 0.0
    %v1108 = vmax.f32 %v1075, 0.0
    %v1109 = vmax.f32 %v1078, 0.0
    %v1110 = vmax.f32 %v1081, 0.0
    %v1111 = vmax.f32 %v1084, 0.0
    %v1112 = vmax.f32 %v1087, 0.0
    %v1113 = vmax.f32 %v1090, 0.0
    %v1114 = vmax.f32 %v1093, 0.0
    %v1115 = vmax.f32 %v1096, 0.0
    %v1116 = vmax.f32 %v1099, 0.0
    %v1117 = vmax.f32 %v1102, 0.0
    %v1118 = vmax.f32 %v1106, %v1107
    %1119 = vst [vmem:[#allocation3] sm:$0xff] %v1118
    %v1120 = vmax.f32 %v1108, %v1109
    %1121 = vst [vmem:[#allocation3 + $0x8] sm:$0xff] %v1120
    %v1122 = vmax.f32 %v1110, %v1111
    %1123 = vst [vmem:[#allocation3 + $0x10] sm:$0xff] %v1122
    %v1124 = vmax.f32 %v1112, %v1113
    %1125 = vst [vmem:[#allocation3 + $0x18] sm:$0xff] %v1124
    %v1126 = vmax.f32 %v1114, %v1115
    %1127 = vst [vmem:[#allocation3 + $0x20] sm:$0xff] %v1126
    %v1128 = vmax.f32 %v1116, %v1117
    %1129 = vst [vmem:[#allocation3 + $0x28] sm:$0xff] %v1128
    %v1130 = vld [vmem:[#allocation3] sm:$0xff]
    %v1131 = vld [vmem:[#allocation3 + $0x8] sm:$0xff]
    %v1132 = vld [vmem:[#allocation3 + $0x10] sm:$0xff]
    %v1133 = vld [vmem:[#allocation3 + $0x18] sm:$0xff]
    %v1134 = vld [vmem:[#allocation3 + $0x20] sm:$0xff]
    %v1135 = vld [vmem:[#allocation3 + $0x10] sm:$0xff]
    %v1136 = vld [vmem:[#allocation3 + $0x18] sm:$0xff]
    %v1137 = vld [vmem:[#allocation3 + $0x20] sm:$0xff]
    %v1138 = vld [vmem:[#allocation3 + $0x28] sm:$0xff]
    %v1139 = vld [vmem:[#allocation5] sm:$0xff]
    %v1140 = vld [vmem:[#allocation5 + $0x8] sm:$0xff]
    %v1141 = vld [vmem:[#allocation5 + $0x10] sm:$0xff]
    %v1142 = vld [vmem:[#allocation5 + $0x18] sm:$0xff]
    %v1143 = vld [vmem:[#allocation5 + $0x20] sm:$0xff]
    %v1144 = vld [vmem:[#allocation5 + $0x28] sm:$0xff]
    %v1145 = vld [vmem:[#allocation5 + $0x30] sm:$0xff]
    %v1146 = vld [vmem:[#allocation5 + $0x38] sm:$0xff]
    %v1147 = vld [vmem:[#allocation5 + $0x40] sm:$0xff]
    %v1148 = vld [vmem:[#allocation5 + $0x48] sm:$0xff]
    %v1149 = vld [vmem:[#allocation5 + $0x50] sm:$0xff]
    %v1150 = vld [vmem:[#allocation5 + $0x58] sm:$0xff]
    %v1151 = vld [vmem:[#allocation5 + $0x60] sm:$0xff]
    %v1152 = vld [vmem:[#allocation5 + $0x68] sm:$0xff]
    %v1153 = vld [vmem:[#allocation5 + $0x70] sm:$0xff]
    %v1154 = vld [vmem:[#allocation5 + $0x78] sm:$0xff]
    %v1155 = vld [vmem:[#allocation5 + $0x80] sm:$0xff]
    %v1156 = vld [vmem:[#allocation5 + $0x88] sm:$0xff]
    %v1157 = vld [vmem:[#allocation5 + $0x90] sm:$0xff]
    %v1158 = vld [vmem:[#allocation5 + $0x98] sm:$0xff]
    %v1159 = vld [vmem:[#allocation5 + $0xa0] sm:$0xff]
    %v1160 = vld [vmem:[#allocation5 + $0xa8] sm:$0xff]
    %v1161 = vld [vmem:[#allocation5 + $0xb0] sm:$0xff]
    %v1162 = vld [vmem:[#allocation5 + $0xb8] sm:$0xff]
    %v1163 = vld [vmem:[#allocation5 + $0xc0] sm:$0xff]
    %v1164 = vld [vmem:[#allocation5 + $0xc8] sm:$0xff]
    %v1165 = vld [vmem:[#allocation5 + $0xd0] sm:$0xff]
    %v1166 = vld [vmem:[#allocation5 + $0xd8] sm:$0xff]
    %v1167 = vld [vmem:[#allocation5 + $0xe0] sm:$0xff]
    %v1168 = vld [vmem:[#allocation5 + $0xe8] sm:$0xff]
    %v1169 = vld [vmem:[#allocation5 + $0xf0] sm:$0xff]
    %v1170 = vld [vmem:[#allocation5 + $0xf8] sm:$0xff]
    %v1171 = vld [vmem:[#allocation5 + $0x100] sm:$0xff]
    %v1172 = vld [vmem:[#allocation5 + $0x108] sm:$0xff]
    %v1173 = vld [vmem:[#allocation5 + $0x110] sm:$0xff]
    %v1174 = vld [vmem:[#allocation5 + $0x118] sm:$0xff]
    %v1175 = vld [vmem:[#allocation5 + $0x120] sm:$0xff]
    %v1176 = vld [vmem:[#allocation5 + $0x128] sm:$0xff]
    %v1177 = vld [vmem:[#allocation5 + $0x130] sm:$0xff]
    %v1178 = vld [vmem:[#allocation5 + $0x138] sm:$0xff]
    %v1179 = vld [vmem:[#allocation5 + $0x140] sm:$0xff]
    %v1180 = vld [vmem:[#allocation5 + $0x148] sm:$0xff]
    %v1181 = vld [vmem:[#allocation5 + $0x150] sm:$0xff]
    %v1182 = vld [vmem:[#allocation5 + $0x158] sm:$0xff]
    %v1183 = vld [vmem:[#allocation5 + $0x160] sm:$0xff]
    %v1184 = vld [vmem:[#allocation5 + $0x168] sm:$0xff]
    %v1185 = vld [vmem:[#allocation5 + $0x170] sm:$0xff]
    %v1186 = vld [vmem:[#allocation5 + $0x178] sm:$0xff]
    %v1187 = vld [vmem:[#allocation5 + $0x180] sm:$0xff]
    %v1188 = vld [vmem:[#allocation5 + $0x188] sm:$0xff]
    %v1189 = vld [vmem:[#allocation5 + $0x190] sm:$0xff]
    %v1190 = vld [vmem:[#allocation5 + $0x198] sm:$0xff]
    %v1191 = vld [vmem:[#allocation5 + $0x1a0] sm:$0xff]
    %v1192 = vld [vmem:[#allocation5 + $0x1a8] sm:$0xff]
    %v1193 = vld [vmem:[#allocation5 + $0x1b0] sm:$0xff]
    %v1194 = vld [vmem:[#allocation5 + $0x1b8] sm:$0xff]
    %v1195 = vld [vmem:[#allocation5 + $0x1c0] sm:$0xff]
    %v1196 = vld [vmem:[#allocation5 + $0x1c8] sm:$0xff]
    %v1197 = vld [vmem:[#allocation5 + $0x1d0] sm:$0xff]
    %v1198 = vld [vmem:[#allocation5 + $0x1d8] sm:$0xff]
    %v1199 = vld [vmem:[#allocation5 + $0x1e0] sm:$0xff]
    %v1200 = vld [vmem:[#allocation5 + $0x1e8] sm:$0xff]
    %v1201 = vld [vmem:[#allocation5 + $0x1f0] sm:$0xff]
    %v1202 = vld [vmem:[#allocation5 + $0x1f8] sm:$0xff]
    %v1203 = vld [vmem:[#allocation5 + $0x200] sm:$0xff]
    %v1204 = vld [vmem:[#allocation5 + $0x208] sm:$0xff]
    %v1205 = vld [vmem:[#allocation5 + $0x210] sm:$0xff]
    %v1206 = vld [vmem:[#allocation5 + $0x218] sm:$0xff]
    %v1207 = vld [vmem:[#allocation5 + $0x220] sm:$0xff]
    %v1208 = vld [vmem:[#allocation5 + $0x228] sm:$0xff]
    %v1209 = vld [vmem:[#allocation5 + $0x230] sm:$0xff]
    %v1210 = vld [vmem:[#allocation5 + $0x238] sm:$0xff]
    %v1211 = vld [vmem:[#allocation5 + $0x240] sm:$0xff]
    %v1212 = vld [vmem:[#allocation5 + $0x248] sm:$0xff]
    %v1213 = vld [vmem:[#allocation5 + $0x250] sm:$0xff]
    %v1214 = vld [vmem:[#allocation5 + $0x258] sm:$0xff]
    %v1215 = vld [vmem:[#allocation5 + $0x260] sm:$0xff]
    %v1216 = vld [vmem:[#allocation5 + $0x268] sm:$0xff]
    %v1217 = vld [vmem:[#allocation5 + $0x270] sm:$0xff]
    %v1218 = vld [vmem:[#allocation5 + $0x278] sm:$0xff]
    %v1219 = vld [vmem:[#allocation5 + $0x280] sm:$0xff]
    %v1220 = vld [vmem:[#allocation5 + $0x288] sm:$0xff]
    %v1221 = vld [vmem:[#allocation5 + $0x290] sm:$0xff]
    %v1222 = vld [vmem:[#allocation5 + $0x298] sm:$0xff]
    %v1223 = vld [vmem:[#allocation5 + $0x2a0] sm:$0xff]
    %v1224 = vld [vmem:[#allocation5 + $0x2a8] sm:$0xff]
    %v1225 = vld [vmem:[#allocation5 + $0x2b0] sm:$0xff]
    %v1226 = vld [vmem:[#allocation5 + $0x2b8] sm:$0xff]
    %v1227 = vld [vmem:[#allocation5 + $0x2c0] sm:$0xff]
    %v1228 = vld [vmem:[#allocation5 + $0x2c8] sm:$0xff]
    %v1229 = vld [vmem:[#allocation5 + $0x2d0] sm:$0xff]
    %v1230 = vld [vmem:[#allocation5 + $0x2d8] sm:$0xff]
    %v1231 = vld [vmem:[#allocation5 + $0x2e0] sm:$0xff]
    %v1232 = vld [vmem:[#allocation5 + $0x2e8] sm:$0xff]
    %v1233 = vld [vmem:[#allocation5 + $0x2f0] sm:$0xff]
    %v1234 = vld [vmem:[#allocation5 + $0x2f8] sm:$0xff]
    %v1235 = vld [vmem:[%s6] sm:$0x3]
    %v1237 = vperm.slane %v1235, 0
    %v1238 = vperm.slane %v1235, 1
    %1241 = vmatpush.msra.mxu0 %v1169
    %1242 = vmatpush.msra.mxu0 %v1167
    %1243 = vmatpush.msra.mxu0 %v1165
    %1244 = vmatpush.msra.mxu0 %v1163
    %1245 = vmatpush.msra.mxu0 %v1161
    %1246 = vmatpush.msra.mxu0 %v1159
    %1247 = vmatpush.msra.mxu0 %v1157
    %1248 = vmatpush.msra.mxu0 %v1155
    %1249 = vmatpush.msra.mxu0 %v1153
    %1250 = vmatpush.msra.mxu0 %v1151
    %1251 = vmatpush.msra.mxu0 %v1149
    %1252 = vmatpush.msra.mxu0 %v1147
    %1253 = vmatpush.msra.mxu0 %v1145
    %1254 = vmatpush.msra.mxu0 %v1143
    %1255 = vmatpush.msra.mxu0 %v1141
    %1256 = vmatpush.msra.mxu0 %v1139
    %1257 = vmatmul.f32.gmra.mxu0 %v1130
    %v1258 = vpop.f32.mrf.mxu0
    %v1259 = vadd.f32 %v1237, %v1258
    %1260 = vmatmul.f32.gmra.mxu0 %v1131
    %v1261 = vpop.f32.mrf.mxu0
    %v1262 = vadd.f32 %v1237, %v1261
    %1263 = vmatmul.f32.gmra.mxu0 %v1132
    %v1264 = vpop.f32.mrf.mxu0
    %v1265 = vadd.f32 %v1237, %v1264
    %1266 = vmatmul.f32.gmra.mxu0 %v1133
    %v1267 = vpop.f32.mrf.mxu0
    %v1268 = vadd.f32 %v1237, %v1267
    %1269 = vdwg.mxu0
    %1270 = vmatpush.msra.mxu0 %v1201
    %1271 = vmatpush.msra.mxu0 %v1199
    %1272 = vmatpush.msra.mxu0 %v1197
    %1273 = vmatpush.msra.mxu0 %v1195
    %1274 = vmatpush.msra.mxu0 %v1193
    %1275 = vmatpush.msra.mxu0 %v1191
    %1276 = vmatpush.msra.mxu0 %v1189
    %1277 = vmatpush.msra.mxu0 %v1187
    %1278 = vmatpush.msra.mxu0 %v1185
    %1279 = vmatpush.msra.mxu0 %v1183
    %1280 = vmatpush.msra.mxu0 %v1181
    %1281 = vmatpush.msra.mxu0 %v1179
    %1282 = vmatpush.msra.mxu0 %v1177
    %1283 = vmatpush.msra.mxu0 %v1175
    %1284 = vmatpush.msra.mxu0 %v1173
    %1285 = vmatpush.msra.mxu0 %v1171
    %1286 = vmatmul.f32.gmra.mxu0 %v1131
    %v1287 = vpop.f32.mrf.mxu0
    %v1288 = vadd.f32 %v1259, %v1287
    %1289 = vmatmul.f32.gmra.mxu0 %v1132
    %v1290 = vpop.f32.mrf.mxu0
    %v1291 = vadd.f32 %v1262, %v1290
    %1292 = vmatmul.f32.gmra.mxu0 %v1133
    %v1293 = vpop.f32.mrf.mxu0
    %v1294 = vadd.f32 %v1265, %v1293
    %1295 = vmatmul.f32.gmra.mxu0 %v1134
    %v1296 = vpop.f32.mrf.mxu0
    %v1297 = vadd.f32 %v1268, %v1296
    %1298 = vdwg.mxu0
    %1299 = vmatpush.msra.mxu0 %v1233
    %1300 = vmatpush.msra.mxu0 %v1231
    %1301 = vmatpush.msra.mxu0 %v1229
    %1302 = vmatpush.msra.mxu0 %v1227
    %1303 = vmatpush.msra.mxu0 %v1225
    %1304 = vmatpush.msra.mxu0 %v1223
    %1305 = vmatpush.msra.mxu0 %v1221
    %1306 = vmatpush.msra.mxu0 %v1219
    %1307 = vmatpush.msra.mxu0 %v1217
    %1308 = vmatpush.msra.mxu0 %v1215
    %1309 = vmatpush.msra.mxu0 %v1213
    %1310 = vmatpush.msra.mxu0 %v1211
    %1311 = vmatpush.msra.mxu0 %v1209
    %1312 = vmatpush.msra.mxu0 %v1207
    %1313 = vmatpush.msra.mxu0 %v1205
    %1314 = vmatpush.msra.mxu0 %v1203
    %1315 = vmatmul.f32.gmra.mxu0 %v1135
    %v1316 = vpop.f32.mrf.mxu0
    %v1317 = vadd.f32 %v1288, %v1316
    %1318 = vmatmul.f32.gmra.mxu0 %v1136
    %v1319 = vpop.f32.mrf.mxu0
    %v1320 = vadd.f32 %v1291, %v1319
    %1321 = vmatmul.f32.gmra.mxu0 %v1137
    %v1322 = vpop.f32.mrf.mxu0
    %v1323 = vadd.f32 %v1294, %v1322
    %1324 = vmatmul.f32.gmra.mxu0 %v1138
    %v1325 = vpop.f32.mrf.mxu0
    %v1326 = vadd.f32 %v1297, %v1325
    %1327 = vdwg.mxu0
    %1328 = vmatpush.msra.mxu0 %v1170
    %1329 = vmatpush.msra.mxu0 %v1168
    %1330 = vmatpush.msra.mxu0 %v1166
    %1331 = vmatpush.msra.mxu0 %v1164
    %1332 = vmatpush.msra.mxu0 %v1162
    %1333 = vmatpush.msra.mxu0 %v1160
    %1334 = vmatpush.msra.mxu0 %v1158
    %1335 = vmatpush.msra.mxu0 %v1156
    %1336 = vmatpush.msra.mxu0 %v1154
    %1337 = vmatpush.msra.mxu0 %v1152
    %1338 = vmatpush.msra.mxu0 %v1150
    %1339 = vmatpush.msra.mxu0 %v1148
    %1340 = vmatpush.msra.mxu0 %v1146
    %1341 = vmatpush.msra.mxu0 %v1144
    %1342 = vmatpush.msra.mxu0 %v1142
    %1343 = vmatpush.msra.mxu0 %v1140
    %1344 = vmatmul.f32.gmra.mxu0 %v1130
    %v1345 = vpop.f32.mrf.mxu0
    %v1346 = vadd.f32 %v1238, %v1345
    %1347 = vmatmul.f32.gmra.mxu0 %v1131
    %v1348 = vpop.f32.mrf.mxu0
    %v1349 = vadd.f32 %v1238, %v1348
    %1350 = vmatmul.f32.gmra.mxu0 %v1132
    %v1351 = vpop.f32.mrf.mxu0
    %v1352 = vadd.f32 %v1238, %v1351
    %1353 = vmatmul.f32.gmra.mxu0 %v1133
    %v1354 = vpop.f32.mrf.mxu0
    %v1355 = vadd.f32 %v1238, %v1354
    %1356 = vdwg.mxu0
    %1357 = vmatpush.msra.mxu0 %v1202
    %1358 = vmatpush.msra.mxu0 %v1200
    %1359 = vmatpush.msra.mxu0 %v1198
    %1360 = vmatpush.msra.mxu0 %v1196
    %1361 = vmatpush.msra.mxu0 %v1194
    %1362 = vmatpush.msra.mxu0 %v1192
    %1363 = vmatpush.msra.mxu0 %v1190
    %1364 = vmatpush.msra.mxu0 %v1188
    %1365 = vmatpush.msra.mxu0 %v1186
    %1366 = vmatpush.msra.mxu0 %v1184
    %1367 = vmatpush.msra.mxu0 %v1182
    %1368 = vmatpush.msra.mxu0 %v1180
    %1369 = vmatpush.msra.mxu0 %v1178
    %1370 = vmatpush.msra.mxu0 %v1176
    %1371 = vmatpush.msra.mxu0 %v1174
    %1372 = vmatpush.msra.mxu0 %v1172
    %1373 = vmatmul.f32.gmra.mxu0 %v1131
    %v1374 = vpop.f32.mrf.mxu0
    %v1375 = vadd.f32 %v1346, %v1374
    %1376 = vmatmul.f32.gmra.mxu0 %v1132
    %v1377 = vpop.f32.mrf.mxu0
    %v1378 = vadd.f32 %v1349, %v1377
    %1379 = vmatmul.f32.gmra.mxu0 %v1133
    %v1380 = vpop.f32.mrf.mxu0
    %v1381 = vadd.f32 %v1352, %v1380
    %1382 = vmatmul.f32.gmra.mxu0 %v1134
    %v1383 = vpop.f32.mrf.mxu0
    %v1384 = vadd.f32 %v1355, %v1383
    %1385 = vdwg.mxu0
    %1386 = vmatpush.msra.mxu0 %v1234
    %1387 = vmatpush.msra.mxu0 %v1232
    %1388 = vmatpush.msra.mxu0 %v1230
    %1389 = vmatpush.msra.mxu0 %v1228
    %1390 = vmatpush.msra.mxu0 %v1226
    %1391 = vmatpush.msra.mxu0 %v1224
    %1392 = vmatpush.msra.mxu0 %v1222
    %1393 = vmatpush.msra.mxu0 %v1220
    %1394 = vmatpush.msra.mxu0 %v1218
    %1395 = vmatpush.msra.mxu0 %v1216
    %1396 = vmatpush.msra.mxu0 %v1214
    %1397 = vmatpush.msra.mxu0 %v1212
    %1398 = vmatpush.msra.mxu0 %v1210
    %1399 = vmatpush.msra.mxu0 %v1208
    %1400 = vmatpush.msra.mxu0 %v1206
    %1401 = vmatpush.msra.mxu0 %v1204
    %1402 = vmatmul.f32.gmra.mxu0 %v1135
    %v1403 = vpop.f32.mrf.mxu0
    %v1404 = vadd.f32 %v1375, %v1403
    %1405 = vmatmul.f32.gmra.mxu0 %v1136
    %v1406 = vpop.f32.mrf.mxu0
    %v1407 = vadd.f32 %v1378, %v1406
    %1408 = vmatmul.f32.gmra.mxu0 %v1137
    %v1409 = vpop.f32.mrf.mxu0
    %v1410 = vadd.f32 %v1381, %v1409
    %1411 = vmatmul.f32.gmra.mxu0 %v1138
    %v1412 = vpop.f32.mrf.mxu0
    %v1413 = vadd.f32 %v1384, %v1412
    %1414 = vdwg.mxu0
    %v1415 = vmax.f32 %v1317, 0.0
    %v1416 = vmax.f32 %v1404, 0.0
    %v1417 = vmax.f32 %v1320, 0.0
    %v1418 = vmax.f32 %v1407, 0.0
    %v1419 = vmax.f32 %v1323, 0.0
    %v1420 = vmax.f32 %v1410, 0.0
    %v1421 = vmax.f32 %v1326, 0.0
    %v1422 = vmax.f32 %v1413, 0.0
    %v1423 = vmax.f32 %v1415, %v1417
    %v1424 = vmax.f32 %v1416, %v1418
    %1425 = vst [vmem:[#allocation4] sm:$0xff] %v1423
    %1426 = vst [vmem:[#allocation4 + $0x8] sm:$0xff] %v1424
    %v1427 = vmax.f32 %v1419, %v1421
    %v1428 = vmax.f32 %v1420, %v1422
    %1429 = vst [vmem:[#allocation4 + $0x10] sm:$0xff] %v1427
    %1430 = vst [vmem:[#allocation4 + $0x18] sm:$0xff] %v1428
    %v1431 = vld [vmem:[#allocation4] sm:$0xff]
    %v1432 = vld [vmem:[#allocation4 + $0x8] sm:$0xff]
    %v1433 = vld [vmem:[#allocation4 + $0x10] sm:$0xff]
    %v1434 = vld [vmem:[#allocation4 + $0x18] sm:$0xff]
    %v1435 = vld [vmem:[#allocation7] sm:$0xff]
    %v1436 = vld [vmem:[#allocation7 + $0x8] sm:$0xff]
    %v1437 = vld [vmem:[#allocation7 + $0x10] sm:$0xff]
    %v1438 = vld [vmem:[#allocation7 + $0x18] sm:$0xff]
    %v1439 = vld [vmem:[#allocation7 + $0x20] sm:$0xff]
    %v1440 = vld [vmem:[#allocation7 + $0x28] sm:$0xff]
    %v1441 = vld [vmem:[#allocation7 + $0x30] sm:$0xff]
    %v1442 = vld [vmem:[#allocation7 + $0x38] sm:$0xff]
    %v1443 = vld [vmem:[#allocation7 + $0x40] sm:$0xff]
    %v1444 = vld [vmem:[#allocation7 + $0x48] sm:$0xff]
    %v1445 = vld [vmem:[#allocation7 + $0x50] sm:$0xff]
    %v1446 = vld [vmem:[#allocation7 + $0x58] sm:$0xff]
    %v1447 = vld [vmem:[#allocation7 + $0x60] sm:$0xff]
    %v1448 = vld [vmem:[#allocation7 + $0x68] sm:$0xff]
    %v1449 = vld [vmem:[#allocation7 + $0x70] sm:$0xff]
    %v1450 = vld [vmem:[#allocation7 + $0x78] sm:$0xff]
    %v1451 = vld [vmem:[#allocation7 + $0x80] sm:$0xff]
    %v1452 = vld [vmem:[#allocation7 + $0x88] sm:$0xff]
    %v1453 = vld [vmem:[#allocation7 + $0x90] sm:$0xff]
    %v1454 = vld [vmem:[#allocation7 + $0x98] sm:$0xff]
    %v1455 = vld [vmem:[#allocation7 + $0xa0] sm:$0xff]
    %v1456 = vld [vmem:[#allocation7 + $0xa8] sm:$0xff]
    %v1457 = vld [vmem:[#allocation7 + $0xb0] sm:$0xff]
    %v1458 = vld [vmem:[#allocation7 + $0xb8] sm:$0xff]
    %v1459 = vld [vmem:[#allocation7 + $0xc0] sm:$0xff]
    %v1460 = vld [vmem:[#allocation7 + $0xc8] sm:$0xff]
    %v1461 = vld [vmem:[#allocation7 + $0xd0] sm:$0xff]
    %v1462 = vld [vmem:[#allocation7 + $0xd8] sm:$0xff]
    %v1463 = vld [vmem:[#allocation7 + $0xe0] sm:$0xff]
    %v1464 = vld [vmem:[#allocation7 + $0xe8] sm:$0xff]
    %v1465 = vld [vmem:[#allocation7 + $0xf0] sm:$0xff]
    %v1466 = vld [vmem:[#allocation7 + $0xf8] sm:$0xff]
    %v1467 = vld [vmem:[#allocation7 + $0x100] sm:$0xff]
    %v1468 = vld [vmem:[#allocation7 + $0x108] sm:$0xff]
    %v1469 = vld [vmem:[#allocation7 + $0x110] sm:$0xff]
    %v1470 = vld [vmem:[#allocation7 + $0x118] sm:$0xff]
    %v1471 = vld [vmem:[#allocation7 + $0x120] sm:$0xff]
    %v1472 = vld [vmem:[#allocation7 + $0x128] sm:$0xff]
    %v1473 = vld [vmem:[#allocation7 + $0x130] sm:$0xff]
    %v1474 = vld [vmem:[#allocation7 + $0x138] sm:$0xff]
    %v1475 = vld [vmem:[#allocation7 + $0x140] sm:$0xff]
    %v1476 = vld [vmem:[#allocation7 + $0x148] sm:$0xff]
    %v1477 = vld [vmem:[#allocation7 + $0x150] sm:$0xff]
    %v1478 = vld [vmem:[#allocation7 + $0x158] sm:$0xff]
    %v1479 = vld [vmem:[#allocation7 + $0x160] sm:$0xff]
    %v1480 = vld [vmem:[#allocation7 + $0x168] sm:$0xff]
    %v1481 = vld [vmem:[#allocation7 + $0x170] sm:$0xff]
    %v1482 = vld [vmem:[#allocation7 + $0x178] sm:$0xff]
    %v1483 = vld [vmem:[#allocation7 + $0x180] sm:$0xff]
    %v1484 = vld [vmem:[#allocation7 + $0x188] sm:$0xff]
    %v1485 = vld [vmem:[#allocation7 + $0x190] sm:$0xff]
    %v1486 = vld [vmem:[#allocation7 + $0x198] sm:$0xff]
    %v1487 = vld [vmem:[#allocation7 + $0x1a0] sm:$0xff]
    %v1488 = vld [vmem:[#allocation7 + $0x1a8] sm:$0xff]
    %v1489 = vld [vmem:[#allocation7 + $0x1b0] sm:$0xff]
    %v1490 = vld [vmem:[#allocation7 + $0x1b8] sm:$0xff]
    %v1491 = vld [vmem:[#allocation7 + $0x1c0] sm:$0xff]
    %v1492 = vld [vmem:[#allocation7 + $0x1c8] sm:$0xff]
    %v1493 = vld [vmem:[#allocation7 + $0x1d0] sm:$0xff]
    %v1494 = vld [vmem:[#allocation7 + $0x1d8] sm:$0xff]
    %v1495 = vld [vmem:[#allocation7 + $0x1e0] sm:$0xff]
    %v1496 = vld [vmem:[#allocation7 + $0x1e8] sm:$0xff]
    %v1497 = vld [vmem:[#allocation7 + $0x1f0] sm:$0xff]
    %v1498 = vld [vmem:[#allocation7 + $0x1f8] sm:$0xff]
    %v1499 = vld [vmem:[%s8] sm:$0x1]
    %v1501 = vperm.slane %v1499, 0
    %1503 = vmatpush.msra.mxu0 %v1450
    %1504 = vmatpush.msra.mxu0 %v1449
    %1505 = vmatpush.msra.mxu0 %v1448
    %1506 = vmatpush.msra.mxu0 %v1447
    %1507 = vmatpush.msra.mxu0 %v1446
    %1508 = vmatpush.msra.mxu0 %v1445
    %1509 = vmatpush.msra.mxu0 %v1444
    %1510 = vmatpush.msra.mxu0 %v1443
    %1511 = vmatpush.msra.mxu0 %v1442
    %1512 = vmatpush.msra.mxu0 %v1441
    %1513 = vmatpush.msra.mxu0 %v1440
    %1514 = vmatpush.msra.mxu0 %v1439
    %1515 = vmatpush.msra.mxu0 %v1438
    %1516 = vmatpush.msra.mxu0 %v1437
    %1517 = vmatpush.msra.mxu0 %v1436
    %1518 = vmatpush.msra.mxu0 %v1435
    %1519 = vmatmul.f32.gmra.mxu0 %v1431
    %v1520 = vpop.f32.mrf.mxu0
    %v1521 = vadd.f32 %v1501, %v1520
    %1522 = vdwg.mxu0
    %1523 = vmatpush.msra.mxu0 %v1466
    %1524 = vmatpush.msra.mxu0 %v1465
    %1525 = vmatpush.msra.mxu0 %v1464
    %1526 = vmatpush.msra.mxu0 %v1463
    %1527 = vmatpush.msra.mxu0 %v1462
    %1528 = vmatpush.msra.mxu0 %v1461
    %1529 = vmatpush.msra.mxu0 %v1460
    %1530 = vmatpush.msra.mxu0 %v1459
    %1531 = vmatpush.msra.mxu0 %v1458
    %1532 = vmatpush.msra.mxu0 %v1457
    %1533 = vmatpush.msra.mxu0 %v1456
    %1534 = vmatpush.msra.mxu0 %v1455
    %1535 = vmatpush.msra.mxu0 %v1454
    %1536 = vmatpush.msra.mxu0 %v1453
    %1537 = vmatpush.msra.mxu0 %v1452
    %1538 = vmatpush.msra.mxu0 %v1451
    %1539 = vmatmul.f32.gmra.mxu0 %v1432
    %v1540 = vpop.f32.mrf.mxu0
    %v1541 = vadd.f32 %v1521, %v1540
    %1542 = vdwg.mxu0
    %1543 = vmatpush.msra.mxu0 %v1482
    %1544 = vmatpush.msra.mxu0 %v1481
    %1545 = vmatpush.msra.mxu0 %v1480
    %1546 = vmatpush.msra.mxu0 %v1479
    %1547 = vmatpush.msra.mxu0 %v1478
    %1548 = vmatpush.msra.mxu0 %v1477
    %1549 = vmatpush.msra.mxu0 %v1476
    %1550 = vmatpush.msra.mxu0 %v1475
    %1551 = vmatpush.msra.mxu0 %v1474
    %1552 = vmatpush.msra.mxu0 %v1473
    %1553 = vmatpush.msra.mxu0 %v1472
    %1554 = vmatpush.msra.mxu0 %v1471
    %1555 = vmatpush.msra.mxu0 %v1470
    %1556 = vmatpush.msra.mxu0 %v1469
    %1557 = vmatpush.msra.mxu0 %v1468
    %1558 = vmatpush.msra.mxu0 %v1467
    %1559 = vmatmul.f32.gmra.mxu0 %v1433
    %v1560 = vpop.f32.mrf.mxu0
    %v1561 = vadd.f32 %v1541, %v1560
    %1562 = vdwg.mxu0
    %1563 = vmatpush.msra.mxu0 %v1498
    %1564 = vmatpush.msra.mxu0 %v1497
    %1565 = vmatpush.msra.mxu0 %v1496
    %1566 = vmatpush.msra.mxu0 %v1495
    %1567 = vmatpush.msra.mxu0 %v1494
    %1568 = vmatpush.msra.mxu0 %v1493
    %1569 = vmatpush.msra.mxu0 %v1492
    %1570 = vmatpush.msra.mxu0 %v1491
    %1571 = vmatpush.msra.mxu0 %v1490
    %1572 = vmatpush.msra.mxu0 %v1489
    %1573 = vmatpush.msra.mxu0 %v1488
    %1574 = vmatpush.msra.mxu0 %v1487
    %1575 = vmatpush.msra.mxu0 %v1486
    %1576 = vmatpush.msra.mxu0 %v1485
    %1577 = vmatpush.msra.mxu0 %v1484
    %1578 = vmatpush.msra.mxu0 %v1483
    %1579 = vmatmul.f32.gmra.mxu0 %v1434
    %v1580 = vpop.f32.mrf.mxu0
    %v1581 = vadd.f32 %v1561, %v1580
    %1582 = vdwg.mxu0
    %v1583 = vmax.f32 %v1581, 0.0
    %v1584 = vld [vmem:[%s9] sm:$0xff]
    %v1585 = vld [vmem:[%s9 + $0x8] sm:$0xff]
    %v1586 = vld [vmem:[%s9 + $0x10] sm:$0xff]
    %v1587 = vld [vmem:[%s9 + $0x18] sm:$0xff]
    %v1588 = vld [vmem:[%s9 + $0x20] sm:$0xff]
    %v1589 = vld [vmem:[%s9 + $0x28] sm:$0xff]
    %v1590 = vld [vmem:[%s9 + $0x30] sm:$0xff]
    %v1591 = vld [vmem:[%s9 + $0x38] sm:$0xff]
    %v1592 = vld [vmem:[%s9 + $0x40] sm:$0xff]
    %v1593 = vld [vmem:[%s9 + $0x48] sm:$0xff]
    %v1594 = vld [vmem:[%s9 + $0x50] sm:$0xff]
    %v1595 = vld [vmem:[%s9 + $0x58] sm:$0xff]
    %v1596 = vld [vmem:[%s9 + $0x60] sm:$0xff]
    %v1597 = vld [vmem:[%s9 + $0x68] sm:$0xff]
    %v1598 = vld [vmem:[%s9 + $0x70] sm:$0xff]
    %v1599 = vld [vmem:[%s9 + $0x78] sm:$0xff]
    %v1600 = vld [vmem:[%s10] sm:$0x1]
    %v1602 = vperm.slane %v1600, 0
    %1604 = vmatpush.msra.mxu0 %v1599
    %1605 = vmatpush.msra.mxu0 %v1598
    %1606 = vmatpush.msra.mxu0 %v1597
    %1607 = vmatpush.msra.mxu0 %v1596
    %1608 = vmatpush.msra.mxu0 %v1595
    %1609 = vmatpush.msra.mxu0 %v1594
    %1610 = vmatpush.msra.mxu0 %v1593
    %1611 = vmatpush.msra.mxu0 %v1592
    %1612 = vmatpush.msra.mxu0 %v1591
    %1613 = vmatpush.msra.mxu0 %v1590
    %1614 = vmatpush.msra.mxu0 %v1589
    %1615 = vmatpush.msra.mxu0 %v1588
    %1616 = vmatpush.msra.mxu0 %v1587
    %1617 = vmatpush.msra.mxu0 %v1586
    %1618 = vmatpush.msra.mxu0 %v1585
    %1619 = vmatpush.msra.mxu0 %v1584
    %1620 = vmatmul.f32.gmra.mxu0 %v1583
    %v1621 = vpop.f32.mrf.mxu0
    %v1622 = vadd.f32 %v1602, %v1621
    %1623 = vdwg.mxu0
    %1624 = vst [vmem:[%s11] sm:$0xff] %v1622
    // Predicated region
    $region54: #{forward_pallas.1} parent=1 // pred_check
      _
    $region55: #{forward_pallas.1} parent=1 // pred_check_branch
      %1626 = sbr.rel (0) target = $region57
    $region56: #{forward_pallas.1} parent=1 // pred_region
      _
    $region57: #{forward_pallas.1} parent=1 // pred_fallthru
      _
    // Predicated region
    $region58: #{forward_pallas.1} parent=1 // pred_check
      _
    $region59: #{forward_pallas.1} parent=1 // pred_check_branch
      %1628 = sbr.rel (0) target = $region61
    $region60: #{forward_pallas.1} parent=1 // pred_region
      _
    $region61: #{forward_pallas.1} parent=1 // pred_fallthru
      _
    %1629 = vsyncpa [#allocation6], 1
    %1630 = vsyncpa [#allocation8], 1

</llo_original>
